<compile_context>
chip_gen: v7x
topology: tpu7x:2x2x1
jax: 0.10.0
libtpu: 0.0.40
codegen_flags: <defaults>
</compile_context>

<pallas_src>
import functools

import jax
import jax.numpy as jnp
from jax.experimental import pallas as pl
from jax.experimental.pallas import tpu as pltpu

HIDDEN = 512
BN_EPS = 1e-5
LANE = 128
STATS_ROWS = 8  # sublane-aligned stats block: row0 = sum, row1 = sum of squares


def _bf16_eup_supported():
    """bf16 transcendentals are profitable (and supported) on v6e / v7x, not v5e."""
    try:
        kind = jax.devices()[0].device_kind.lower()
    except Exception:  # pragma: no cover - defensive; f32 path is always safe
        return False
    return ("v6" in kind) or ("v7" in kind) or ("tpu7" in kind)


_ACT_DTYPE = jnp.bfloat16 if _bf16_eup_supported() else jnp.float32


def _sigmoid(x, dtype=jnp.float32):
    """sigmoid(x) = 0.5*(1 + tanh(x/2)): one EUP push per element, exact."""
    xh = (x * 0.5).astype(dtype)
    return 0.5 * (jnp.tanh(xh) + 1.0)


def _partial_stats(z, tm, valid_rows, mask_rows):
    """(STATS_ROWS, H) tile: row0 = per-feature sum, row1 = per-feature sum of squares.

    Padded batch rows (global row index >= valid_rows) are masked out so they do not
    bias the BatchNorm batch statistics.
    """
    if mask_rows:
        rows = pl.program_id(0) * tm + jax.lax.broadcasted_iota(jnp.int32, (tm, 1), 0)
        zm = jnp.where(rows < valid_rows, z, 0.0)
    else:
        zm = z
    psum = jnp.sum(zm, axis=0, keepdims=True)
    psumsq = jnp.sum(zm * z, axis=0, keepdims=True)
    pad = jnp.zeros((STATS_ROWS - 2, z.shape[1]), jnp.float32)
    return jnp.concatenate([psum, psumsq, pad], axis=0)


# ---- stage 1 kernel: z1 = x @ W1 + b1 (f32 acc), emit BN1 partial stats, store z1 bf16 ----
def _lin_stats_kernel(x_ref, w_ref, b_ref, z_ref, stats_ref, *, tm, valid_rows, mask_rows):
    z = jnp.dot(x_ref[...], w_ref[...], preferred_element_type=jnp.float32)
    z = z + b_ref[...]
    stats_ref[...] = _partial_stats(z, tm, valid_rows, mask_rows)[None]
    z_ref[...] = z.astype(z_ref.dtype)


# ---- stage 2 kernel: a = sigmoid(BN1(z1)); z2 = a @ W2 + b2, BN2 stats, store z2 bf16 ----
def _bn_sig_lin_stats_kernel(z1_ref, sc_ref, sh_ref, w_ref, b_ref, z2_ref, stats_ref,
                             *, tm, valid_rows, mask_rows, act_dtype):
    z1 = z1_ref[...].astype(jnp.float32)
    a = _sigmoid(z1 * sc_ref[...] + sh_ref[...], act_dtype)
    z2 = jnp.dot(a.astype(jnp.bfloat16), w_ref[...], preferred_element_type=jnp.float32)
    z2 = z2 + b_ref[...]
    stats_ref[...] = _partial_stats(z2, tm, valid_rows, mask_rows)[None]
    z2_ref[...] = z2.astype(z2_ref.dtype)


# ---- stage 3 kernel: a2 = sigmoid(BN2(z2)); out = sigmoid(sigmoid(a2@W3+b3)@W4+b4) ----
def _bn_sig_tail_kernel(z2_ref, sc_ref, sh_ref, w3_ref, b3_ref, w4_ref, b4_ref, out_ref,
                        *, act_dtype):
    z2 = z2_ref[...].astype(jnp.float32)
    a2 = _sigmoid(z2 * sc_ref[...] + sh_ref[...], act_dtype)
    h3 = jnp.dot(a2.astype(jnp.bfloat16), w3_ref[...], preferred_element_type=jnp.float32)
    h3 = _sigmoid(h3 + b3_ref[...], act_dtype)
    h4 = jnp.dot(h3.astype(jnp.bfloat16), w4_ref[...], preferred_element_type=jnp.float32)
    out_ref[...] = _sigmoid(h4 + b4_ref[...], jnp.float32).astype(out_ref.dtype)


def _pick_batch_tile(batch):
    """Largest tile (<=1024) keeping padding waste small and nt >= 2 whenever possible
    (so the 'parallel' batch axis can split across both v7x TensorCores)."""
    tm = 8
    for cand in (16, 32, 64, 128, 256, 512, 1024):
        if batch >= 4 * cand:
            tm = cand
    return tm


def _bn_fold(pstats, batch, gamma, beta):
    """Fold batch-stats BatchNorm into a single FMA: h*scale + shift."""
    s = jnp.sum(pstats[:, 0, :], axis=0)
    ss = jnp.sum(pstats[:, 1, :], axis=0)
    mean = s / batch
    var = jnp.maximum(ss / batch - mean * mean, 0.0)  # biased variance (PyTorch training)
    inv_std = jax.lax.rsqrt(var + BN_EPS)
    scale = gamma.reshape(-1) * inv_std
    shift = beta.reshape(-1) - mean * scale
    return scale.reshape(1, -1), shift.reshape(1, -1)


def prepare_params(params, n_inputs):
    """One-time weight prep: pad feature dims to a lane multiple, cast matmul operands to bf16."""
    f_pad = max(LANE, ((n_inputs + LANE - 1) // LANE) * LANE)
    return {
        "w1": jnp.pad(params["w1"], ((0, f_pad - n_inputs), (0, 0))).astype(jnp.bfloat16),
        "b1": params["b1"],
        "g1": params["g1"], "be1": params["be1"],
        "w2": params["w2"].astype(jnp.bfloat16),
        "b2": params["b2"],
        "g2": params["g2"], "be2": params["be2"],
        "w3": params["w3"].astype(jnp.bfloat16),
        "b3": params["b3"],
        "w4": jnp.pad(params["w4"], ((0, 0), (0, f_pad - n_inputs))).astype(jnp.bfloat16),
        "b4": jnp.pad(params["b4"], ((0, 0), (0, f_pad - n_inputs))),
    }


@jax.jit
def deepae_forward(x, prepped):
    """x: (B, n_inputs) float32. prepped: output of prepare_params (bf16 weights, padded)."""
    batch, n_inputs = x.shape
    f_pad = prepped["w1"].shape[0]
    h = HIDDEN

    tm = _pick_batch_tile(batch)
    batch_p = ((batch + tm - 1) // tm) * tm
    nt = batch_p // tm
    mask_rows = batch_p != batch

    par = pltpu.CompilerParams(dimension_semantics=("parallel",))

    # Lane-dense, bf16 matmul input (padded batch rows are zero -> masked out of BN stats).
    x_p = jnp.pad(x, ((0, batch_p - batch), (0, f_pad - n_inputs))).astype(jnp.bfloat16)

    row_spec_h = pl.BlockSpec((1, h), lambda i: (0, 0))          # biases / BN scale-shift
    act_spec_h = pl.BlockSpec((tm, h), lambda i: (i, 0))         # (B, 512) activations
    stats_spec = pl.BlockSpec((1, STATS_ROWS, h), lambda i: (i, 0, 0))
    stats_shape = jax.ShapeDtypeStruct((nt, STATS_ROWS, h), jnp.float32)
    z_shape = jax.ShapeDtypeStruct((batch_p, h), jnp.bfloat16)   # bf16 intermediates

    # ---- stage 1: linear1 + BN1 partial stats ----
    z1, ps1 = pl.pallas_call(
        functools.partial(_lin_stats_kernel, tm=tm, valid_rows=batch, mask_rows=mask_rows),
        grid=(nt,),
        in_specs=[
            pl.BlockSpec((tm, f_pad), lambda i: (i, 0)),
            pl.BlockSpec((f_pad, h), lambda i: (0, 0)),
            row_spec_h,
        ],
        out_specs=[act_spec_h, stats_spec],
        out_shape=[z_shape, stats_shape],
        compiler_params=par,
    )(x_p, prepped["w1"], prepped["b1"])
    sc1, sh1 = _bn_fold(ps1, batch, prepped["g1"], prepped["be1"])

    # ---- stage 2: BN1 + sigmoid + linear2 + BN2 partial stats ----
    z2, ps2 = pl.pallas_call(
        functools.partial(_bn_sig_lin_stats_kernel, tm=tm, valid_rows=batch,
                          mask_rows=mask_rows, act_dtype=_ACT_DTYPE),
        grid=(nt,),
        in_specs=[
            act_spec_h, row_spec_h, row_spec_h,
            pl.BlockSpec((h, h), lambda i: (0, 0)),
            row_spec_h,
        ],
        out_specs=[act_spec_h, stats_spec],
        out_shape=[z_shape, stats_shape],
        compiler_params=par,
    )(z1, sc1, sh1, prepped["w2"], prepped["b2"])
    sc2, sh2 = _bn_fold(ps2, batch, prepped["g2"], prepped["be2"])

    # ---- stage 3: BN2 + sigmoid + linear3 + sigmoid + linear4 + sigmoid ----
    out_pad = pl.pallas_call(
        functools.partial(_bn_sig_tail_kernel, act_dtype=_ACT_DTYPE),
        grid=(nt,),
        in_specs=[
            act_spec_h, row_spec_h, row_spec_h,
            pl.BlockSpec((h, h), lambda i: (0, 0)),
            row_spec_h,
            pl.BlockSpec((h, f_pad), lambda i: (0, 0)),
            pl.BlockSpec((1, f_pad), lambda i: (0, 0)),
        ],
        out_specs=pl.BlockSpec((tm, f_pad), lambda i: (i, 0)),
        out_shape=jax.ShapeDtypeStruct((batch_p, f_pad), jnp.float32),
        compiler_params=par,
    )(z2, sc2, sh2, prepped["w3"], prepped["b3"], prepped["w4"], prepped["b4"])

    return out_pad[:batch, :n_inputs]


def init_params(key, n_inputs):
    """Deterministic PyTorch-style init. Linear weights stored as (in, out), f32."""
    def linear(k, fan_in, fan_out):
        kw, kb = jax.random.split(k)
        bound = 1.0 / jnp.sqrt(jnp.float32(fan_in))
        w = jax.random.uniform(kw, (fan_in, fan_out), jnp.float32, -bound, bound)
        b = jax.random.uniform(kb, (1, fan_out), jnp.float32, -bound, bound)
        return w, b

    k1, k2, k3, k4 = jax.random.split(key, 4)
    w1, b1 = linear(k1, n_inputs, HIDDEN)
    w2, b2 = linear(k2, HIDDEN, HIDDEN)
    w3, b3 = linear(k3, HIDDEN, HIDDEN)
    w4, b4 = linear(k4, HIDDEN, n_inputs)
    return {
        "w1": w1, "b1": b1,
        "g1": jnp.ones((1, HIDDEN), jnp.float32),
        "be1": jnp.zeros((1, HIDDEN), jnp.float32),
        "w2": w2, "b2": b2,
        "g2": jnp.ones((1, HIDDEN), jnp.float32),
        "be2": jnp.zeros((1, HIDDEN), jnp.float32),
        "w3": w3, "b3": b3,
        "w4": w4, "b4": b4,
    }


def _reference_forward(x, p):
    """Pure-JAX f32 reference matching the PyTorch forward (training-mode BN)."""
    def bn(h, g, b):
        mean = jnp.mean(h, axis=0, keepdims=True)
        var = jnp.mean((h - mean) ** 2, axis=0, keepdims=True)
        return (h - mean) / jnp.sqrt(var + BN_EPS) * g + b

    h = jax.nn.sigmoid(bn(x @ p["w1"] + p["b1"], p["g1"], p["be1"]))
    h = jax.nn.sigmoid(bn(h @ p["w2"] + p["b2"], p["g2"], p["be2"]))
    h = jax.nn.sigmoid(h @ p["w3"] + p["b3"])
    return jax.nn.sigmoid(h @ p["w4"] + p["b4"])


if __name__ == "__main__":
    key = jax.random.PRNGKey(0)
    kx, kx2, kp = jax.random.split(key, 3)

    n_inputs = 32
    params = init_params(kp, n_inputs)
    prepped = prepare_params(params, n_inputs)

    # Small demo batch (no padding path).
    batch = 8
    x = jax.random.normal(kx, (batch, n_inputs), jnp.float32)
    out = jax.block_until_ready(deepae_forward(x, prepped))
    ref = _reference_forward(x, params)
    assert out.shape == (batch, n_inputs)
    err = float(jnp.max(jnp.abs(out - ref)))
    assert err < 2e-2, f"mismatch vs reference (batch={batch}): max abs err {err}"

    # Non-multiple batch: exercises batch padding + masked BN statistics.
    batch2 = 100
    x2 = jax.random.normal(kx2, (batch2, n_inputs), jnp.float32)
    out2 = jax.block_until_ready(deepae_forward(x2, prepped))
    ref2 = _reference_forward(x2, params)
    assert out2.shape == (batch2, n_inputs)
    err2 = float(jnp.max(jnp.abs(out2 - ref2)))
    assert err2 < 2e-2, f"mismatch vs reference (batch={batch2}): max abs err {err2}"

    print("KERNEL_OK")
</pallas_src>

<mosaic_0001>
module attributes {stable_mosaic.version = 11 : i64} {
  func.func @_lin_stats_kernel(%arg0: i32, %arg1: memref<8x128xbf16, #tpu.memory_space<vmem>>, %arg2: memref<128x512xbf16, #tpu.memory_space<vmem>>, %arg3: memref<1x512xf32, #tpu.memory_space<vmem>>, %arg4: memref<8x512xbf16, #tpu.memory_space<vmem>>, %arg5: memref<1x8x512xf32, #tpu.memory_space<vmem>>) attributes {dimension_semantics = [#tpu.dimension_semantics<parallel>], iteration_bounds = array<i64: 1>, scalar_prefetch = 0 : i64, scratch_operands = 0 : i64, tpu.core_type = #tpu.core_type<tc>, window_params = [{transform_indices = @transform_0, window_bounds = array<i64: 8, 128>}, {pipeline_mode = #tpu.pipeline_mode<synchronous>, transform_indices = @transform_1, window_bounds = array<i64: 128, 512>}, {pipeline_mode = #tpu.pipeline_mode<synchronous>, transform_indices = @transform_2, window_bounds = array<i64: 1, 512>}, {transform_indices = @transform_3, window_bounds = array<i64: 8, 512>}, {transform_indices = @transform_4, window_bounds = array<i64: 1, 8, 512>}]} {
    %c0 = arith.constant 0 : index
    %c0_0 = arith.constant 0 : index
    %0 = vector.load %arg1[%c0, %c0_0] : memref<8x128xbf16, #tpu.memory_space<vmem>>, vector<8x128xbf16>
    %c0_1 = arith.constant 0 : index
    %c0_2 = arith.constant 0 : index
    %1 = vector.load %arg2[%c0_1, %c0_2] : memref<128x512xbf16, #tpu.memory_space<vmem>>, vector<128x512xbf16>
    %cst = arith.constant dense<0.000000e+00> : vector<8x512xf32>
    %2 = tpu.matmul %0, %1, %cst {dimension_numbers = #tpu.dot_dimension_numbers<[1], [0], [0], [1], [0, 0, 1, 1], [], []>} : vector<8x128xbf16>, vector<128x512xbf16>, vector<8x512xf32> -> vector<8x512xf32>
    %c0_3 = arith.constant 0 : index
    %c0_4 = arith.constant 0 : index
    %3 = vector.load %arg3[%c0_3, %c0_4] : memref<1x512xf32, #tpu.memory_space<vmem>>, vector<1x512xf32>
    %4 = vector.broadcast %3 : vector<1x512xf32> to vector<8x512xf32>
    %5 = arith.addf %2, %4 : vector<8x512xf32>
    %cst_5 = arith.constant dense<0.000000e+00> : vector<512xf32>
    %6 = vector.multi_reduction <add>, %5, %cst_5 [0] : vector<8x512xf32> to vector<512xf32>
    %7 = vector.shape_cast %6 : vector<512xf32> to vector<1x512xf32>
    %8 = arith.mulf %5, %5 : vector<8x512xf32>
    %cst_6 = arith.constant dense<0.000000e+00> : vector<512xf32>
    %9 = vector.multi_reduction <add>, %8, %cst_6 [0] : vector<8x512xf32> to vector<512xf32>
    %10 = vector.shape_cast %9 : vector<512xf32> to vector<1x512xf32>
    %cst_7 = arith.constant 0.000000e+00 : f32
    %11 = vector.broadcast %cst_7 : f32 to vector<6x512xf32>
    %12 = tpu.concatenate %7, %10, %11 in 0 : vector<1x512xf32>, vector<1x512xf32>, vector<6x512xf32> -> vector<8x512xf32>
    %13 = vector.shape_cast %12 : vector<8x512xf32> to vector<1x8x512xf32>
    %c0_8 = arith.constant 0 : index
    %c0_9 = arith.constant 0 : index
    %c0_10 = arith.constant 0 : index
    %14 = vector.load %arg5[%c0_8, %c0_9, %c0_10] : memref<1x8x512xf32, #tpu.memory_space<vmem>>, vector<1x8x512xf32>
    tpu.vector_store %arg5[%c0_8, %c0_9, %c0_10], %13 {strides = array<i32>} : memref<1x8x512xf32, #tpu.memory_space<vmem>>, vector<1x8x512xf32>,
    %15 = arith.truncf %5 : vector<8x512xf32> to vector<8x512xbf16>
    %c0_11 = arith.constant 0 : index
    %c0_12 = arith.constant 0 : index
    %16 = vector.load %arg4[%c0_11, %c0_12] : memref<8x512xbf16, #tpu.memory_space<vmem>>, vector<8x512xbf16>
    tpu.vector_store %arg4[%c0_11, %c0_12], %15 {strides = array<i32>} : memref<8x512xbf16, #tpu.memory_space<vmem>>, vector<8x512xbf16>,
    return
  }
  func.func @transform_0(%arg0: i32) -> (i32, i32) {
    %c0_i32 = arith.constant 0 : i32
    %c0_i32_0 = arith.constant 0 : i32
    return %arg0, %c0_i32 : i32, i32
  }
  func.func @transform_1(%arg0: i32) -> (i32, i32) {
    %c0_i32 = arith.constant 0 : i32
    %c0_i32_0 = arith.constant 0 : i32
    %c0_i32_1 = arith.constant 0 : i32
    return %c0_i32, %c0_i32_0 : i32, i32
  }
  func.func @transform_2(%arg0: i32) -> (i32, i32) {
    %c0_i32 = arith.constant 0 : i32
    %c0_i32_0 = arith.constant 0 : i32
    %c0_i32_1 = arith.constant 0 : i32
    return %c0_i32, %c0_i32_0 : i32, i32
  }
  func.func @transform_3(%arg0: i32) -> (i32, i32) {
    %c0_i32 = arith.constant 0 : i32
    %c0_i32_0 = arith.constant 0 : i32
    return %arg0, %c0_i32 : i32, i32
  }
  func.func @transform_4(%arg0: i32) -> (i32, i32, i32) {
    %c0_i32 = arith.constant 0 : i32
    %c0_i32_0 = arith.constant 0 : i32
    %c0_i32_1 = arith.constant 0 : i32
    return %arg0, %c0_i32, %c0_i32_0 : i32, i32, i32
  }
}

module attributes {stable_mosaic.version = 11 : i64} {
  func.func @_bn_sig_tail_kernel(%arg0: i32, %arg1: memref<8x512xbf16, #tpu.memory_space<vmem>>, %arg2: memref<1x512xf32, #tpu.memory_space<vmem>>, %arg3: memref<1x512xf32, #tpu.memory_space<vmem>>, %arg4: memref<512x512xbf16, #tpu.memory_space<vmem>>, %arg5: memref<1x512xf32, #tpu.memory_space<vmem>>, %arg6: memref<512x128xbf16, #tpu.memory_space<vmem>>, %arg7: memref<1x128xf32, #tpu.memory_space<vmem>>, %arg8: memref<8x128xf32, #tpu.memory_space<vmem>>) attributes {dimension_semantics = [#tpu.dimension_semantics<parallel>], iteration_bounds = array<i64: 1>, scalar_prefetch = 0 : i64, scratch_operands = 0 : i64, tpu.core_type = #tpu.core_type<tc>, window_params = [{transform_indices = @transform_0, window_bounds = array<i64: 8, 512>}, {pipeline_mode = #tpu.pipeline_mode<synchronous>, transform_indices = @transform_1, window_bounds = array<i64: 1, 512>}, {pipeline_mode = #tpu.pipeline_mode<synchronous>, transform_indices = @transform_2, window_bounds = array<i64: 1, 512>}, {pipeline_mode = #tpu.pipeline_mode<synchronous>, transform_indices = @transform_3, window_bounds = array<i64: 512, 512>}, {pipeline_mode = #tpu.pipeline_mode<synchronous>, transform_indices = @transform_4, window_bounds = array<i64: 1, 512>}, {pipeline_mode = #tpu.pipeline_mode<synchronous>, transform_indices = @transform_5, window_bounds = array<i64: 512, 128>}, {pipeline_mode = #tpu.pipeline_mode<synchronous>, transform_indices = @transform_6, window_bounds = array<i64: 1, 128>}, {transform_indices = @transform_7, window_bounds = array<i64: 8, 128>}]} {
    %c0 = arith.constant 0 : index
    %c0_0 = arith.constant 0 : index
    %0 = vector.load %arg1[%c0, %c0_0] : memref<8x512xbf16, #tpu.memory_space<vmem>>, vector<8x512xbf16>
    %1 = arith.extf %0 : vector<8x512xbf16> to vector<8x512xf32>
    %c0_1 = arith.constant 0 : index
    %c0_2 = arith.constant 0 : index
    %2 = vector.load %arg2[%c0_1, %c0_2] : memref<1x512xf32, #tpu.memory_space<vmem>>, vector<1x512xf32>
    %3 = vector.broadcast %2 : vector<1x512xf32> to vector<8x512xf32>
    %4 = arith.mulf %1, %3 : vector<8x512xf32>
    %c0_3 = arith.constant 0 : index
    %c0_4 = arith.constant 0 : index
    %5 = vector.load %arg3[%c0_3, %c0_4] : memref<1x512xf32, #tpu.memory_space<vmem>>, vector<1x512xf32>
    %6 = vector.broadcast %5 : vector<1x512xf32> to vector<8x512xf32>
    %7 = arith.addf %4, %6 : vector<8x512xf32>
    %cst = arith.constant 5.000000e-01 : f32
    %8 = vector.broadcast %cst : f32 to vector<8x512xf32>
    %9 = arith.mulf %7, %8 : vector<8x512xf32>
    %10 = math.tanh %9 : vector<8x512xf32>
    %cst_5 = arith.constant 1.000000e+00 : f32
    %11 = vector.broadcast %cst_5 : f32 to vector<8x512xf32>
    %12 = arith.addf %10, %11 : vector<8x512xf32>
    %cst_6 = arith.constant 5.000000e-01 : f32
    %13 = vector.broadcast %cst_6 : f32 to vector<8x512xf32>
    %14 = arith.mulf %13, %12 : vector<8x512xf32>
    %15 = arith.truncf %14 : vector<8x512xf32> to vector<8x512xbf16>
    %c0_7 = arith.constant 0 : index
    %c0_8 = arith.constant 0 : index
    %16 = vector.load %arg4[%c0_7, %c0_8] : memref<512x512xbf16, #tpu.memory_space<vmem>>, vector<512x512xbf16>
    %cst_9 = arith.constant dense<0.000000e+00> : vector<8x512xf32>
    %17 = tpu.matmul %15, %16, %cst_9 {dimension_numbers = #tpu.dot_dimension_numbers<[1], [0], [0], [1], [0, 0, 1, 1], [], []>} : vector<8x512xbf16>, vector<512x512xbf16>, vector<8x512xf32> -> vector<8x512xf32>
    %c0_10 = arith.constant 0 : index
    %c0_11 = arith.constant 0 : index
    %18 = vector.load %arg5[%c0_10, %c0_11] : memref<1x512xf32, #tpu.memory_space<vmem>>, vector<1x512xf32>
    %19 = vector.broadcast %18 : vector<1x512xf32> to vector<8x512xf32>
    %20 = arith.addf %17, %19 : vector<8x512xf32>
    %cst_12 = arith.constant 5.000000e-01 : f32
    %21 = vector.broadcast %cst_12 : f32 to vector<8x512xf32>
    %22 = arith.mulf %20, %21 : vector<8x512xf32>
    %23 = math.tanh %22 : vector<8x512xf32>
    %cst_13 = arith.constant 1.000000e+00 : f32
    %24 = vector.broadcast %cst_13 : f32 to vector<8x512xf32>
    %25 = arith.addf %23, %24 : vector<8x512xf32>
    %cst_14 = arith.constant 5.000000e-01 : f32
    %26 = vector.broadcast %cst_14 : f32 to vector<8x512xf32>
    %27 = arith.mulf %26, %25 : vector<8x512xf32>
    %28 = arith.truncf %27 : vector<8x512xf32> to vector<8x512xbf16>
    %c0_15 = arith.constant 0 : index
    %c0_16 = arith.constant 0 : index
    %29 = vector.load %arg6[%c0_15, %c0_16] : memref<512x128xbf16, #tpu.memory_space<vmem>>, vector<512x128xbf16>
    %cst_17 = arith.constant dense<0.000000e+00> : vector<8x128xf32>
    %30 = tpu.matmul %28, %29, %cst_17 {dimension_numbers = #tpu.dot_dimension_numbers<[1], [0], [0], [1], [0, 0, 1, 1], [], []>} : vector<8x512xbf16>, vector<512x128xbf16>, vector<8x128xf32> -> vector<8x128xf32>
    %c0_18 = arith.constant 0 : index
    %c0_19 = arith.constant 0 : index
    %31 = vector.load %arg7[%c0_18, %c0_19] : memref<1x128xf32, #tpu.memory_space<vmem>>, vector<1x128xf32>
    %32 = vector.broadcast %31 : vector<1x128xf32> to vector<8x128xf32>
    %33 = arith.addf %30, %32 : vector<8x128xf32>
    %cst_20 = arith.constant 5.000000e-01 : f32
    %34 = vector.broadcast %cst_20 : f32 to vector<8x128xf32>
    %35 = arith.mulf %33, %34 : vector<8x128xf32>
    %36 = math.tanh %35 : vector<8x128xf32>
    %cst_21 = arith.constant 1.000000e+00 : f32
    %37 = vector.broadcast %cst_21 : f32 to vector<8x128xf32>
    %38 = arith.addf %36, %37 : vector<8x128xf32>
    %cst_22 = arith.constant 5.000000e-01 : f32
    %39 = vector.broadcast %cst_22 : f32 to vector<8x128xf32>
    %40 = arith.mulf %39, %38 : vector<8x128xf32>
    %c0_23 = arith.constant 0 : index
    %c0_24 = arith.constant 0 : index
    %41 = vector.load %arg8[%c0_23, %c0_24] : memref<8x128xf32, #tpu.memory_space<vmem>>, vector<8x128xf32>
    tpu.vector_store %arg8[%c0_23, %c0_24], %40 {strides = array<i32>} : memref<8x128xf32, #tpu.memory_space<vmem>>, vector<8x128xf32>,
    return
  }
  func.func @transform_0(%arg0: i32) -> (i32, i32) {
    %c0_i32 = arith.constant 0 : i32
    %c0_i32_0 = arith.constant 0 : i32
    return %arg0, %c0_i32 : i32, i32
  }
  func.func @transform_1(%arg0: i32) -> (i32, i32) {
    %c0_i32 = arith.constant 0 : i32
    %c0_i32_0 = arith.constant 0 : i32
    %c0_i32_1 = arith.constant 0 : i32
    return %c0_i32, %c0_i32_0 : i32, i32
  }
  func.func @transform_2(%arg0: i32) -> (i32, i32) {
    %c0_i32 = arith.constant 0 : i32
    %c0_i32_0 = arith.constant 0 : i32
    %c0_i32_1 = arith.constant 0 : i32
    return %c0_i32, %c0_i32_0 : i32, i32
  }
  func.func @transform_3(%arg0: i32) -> (i32, i32) {
    %c0_i32 = arith.constant 0 : i32
    %c0_i32_0 = arith.constant 0 : i32
    %c0_i32_1 = arith.constant 0 : i32
    return %c0_i32, %c0_i32_0 : i32, i32
  }
  func.func @transform_4(%arg0: i32) -> (i32, i32) {
    %c0_i32 = arith.constant 0 : i32
    %c0_i32_0 = arith.constant 0 : i32
    %c0_i32_1 = arith.constant 0 : i32
    return %c0_i32, %c0_i32_0 : i32, i32
  }
  func.func @transform_5(%arg0: i32) -> (i32, i32) {
    %c0_i32 = arith.constant 0 : i32
    %c0_i32_0 = arith.constant 0 : i32
    %c0_i32_1 = arith.constant 0 : i32
    return %c0_i32, %c0_i32_0 : i32, i32
  }
  func.func @transform_6(%arg0: i32) -> (i32, i32) {
    %c0_i32 = arith.constant 0 : i32
    %c0_i32_0 = arith.constant 0 : i32
    %c0_i32_1 = arith.constant 0 : i32
    return %c0_i32, %c0_i32_0 : i32, i32
  }
  func.func @transform_7(%arg0: i32) -> (i32, i32) {
    %c0_i32 = arith.constant 0 : i32
    %c0_i32_0 = arith.constant 0 : i32
    return %arg0, %c0_i32 : i32, i32
  }
}

module attributes {stable_mosaic.version = 11 : i64} {
  func.func @_bn_sig_lin_stats_kernel(%arg0: i32, %arg1: memref<8x512xbf16, #tpu.memory_space<vmem>>, %arg2: memref<1x512xf32, #tpu.memory_space<vmem>>, %arg3: memref<1x512xf32, #tpu.memory_space<vmem>>, %arg4: memref<512x512xbf16, #tpu.memory_space<vmem>>, %arg5: memref<1x512xf32, #tpu.memory_space<vmem>>, %arg6: memref<8x512xbf16, #tpu.memory_space<vmem>>, %arg7: memref<1x8x512xf32, #tpu.memory_space<vmem>>) attributes {dimension_semantics = [#tpu.dimension_semantics<parallel>], iteration_bounds = array<i64: 1>, scalar_prefetch = 0 : i64, scratch_operands = 0 : i64, tpu.core_type = #tpu.core_type<tc>, window_params = [{transform_indices = @transform_0, window_bounds = array<i64: 8, 512>}, {pipeline_mode = #tpu.pipeline_mode<synchronous>, transform_indices = @transform_1, window_bounds = array<i64: 1, 512>}, {pipeline_mode = #tpu.pipeline_mode<synchronous>, transform_indices = @transform_2, window_bounds = array<i64: 1, 512>}, {pipeline_mode = #tpu.pipeline_mode<synchronous>, transform_indices = @transform_3, window_bounds = array<i64: 512, 512>}, {pipeline_mode = #tpu.pipeline_mode<synchronous>, transform_indices = @transform_4, window_bounds = array<i64: 1, 512>}, {transform_indices = @transform_5, window_bounds = array<i64: 8, 512>}, {transform_indices = @transform_6, window_bounds = array<i64: 1, 8, 512>}]} {
    %c0 = arith.constant 0 : index
    %c0_0 = arith.constant 0 : index
    %0 = vector.load %arg1[%c0, %c0_0] : memref<8x512xbf16, #tpu.memory_space<vmem>>, vector<8x512xbf16>
    %1 = arith.extf %0 : vector<8x512xbf16> to vector<8x512xf32>
    %c0_1 = arith.constant 0 : index
    %c0_2 = arith.constant 0 : index
    %2 = vector.load %arg2[%c0_1, %c0_2] : memref<1x512xf32, #tpu.memory_space<vmem>>, vector<1x512xf32>
    %3 = vector.broadcast %2 : vector<1x512xf32> to vector<8x512xf32>
    %4 = arith.mulf %1, %3 : vector<8x512xf32>
    %c0_3 = arith.constant 0 : index
    %c0_4 = arith.constant 0 : index
    %5 = vector.load %arg3[%c0_3, %c0_4] : memref<1x512xf32, #tpu.memory_space<vmem>>, vector<1x512xf32>
    %6 = vector.broadcast %5 : vector<1x512xf32> to vector<8x512xf32>
    %7 = arith.addf %4, %6 : vector<8x512xf32>
    %cst = arith.constant 5.000000e-01 : f32
    %8 = vector.broadcast %cst : f32 to vector<8x512xf32>
    %9 = arith.mulf %7, %8 : vector<8x512xf32>
    %10 = math.tanh %9 : vector<8x512xf32>
    %cst_5 = arith.constant 1.000000e+00 : f32
    %11 = vector.broadcast %cst_5 : f32 to vector<8x512xf32>
    %12 = arith.addf %10, %11 : vector<8x512xf32>
    %cst_6 = arith.constant 5.000000e-01 : f32
    %13 = vector.broadcast %cst_6 : f32 to vector<8x512xf32>
    %14 = arith.mulf %13, %12 : vector<8x512xf32>
    %15 = arith.truncf %14 : vector<8x512xf32> to vector<8x512xbf16>
    %c0_7 = arith.constant 0 : index
    %c0_8 = arith.constant 0 : index
    %16 = vector.load %arg4[%c0_7, %c0_8] : memref<512x512xbf16, #tpu.memory_space<vmem>>, vector<512x512xbf16>
    %cst_9 = arith.constant dense<0.000000e+00> : vector<8x512xf32>
    %17 = tpu.matmul %15, %16, %cst_9 {dimension_numbers = #tpu.dot_dimension_numbers<[1], [0], [0], [1], [0, 0, 1, 1], [], []>} : vector<8x512xbf16>, vector<512x512xbf16>, vector<8x512xf32> -> vector<8x512xf32>
    %c0_10 = arith.constant 0 : index
    %c0_11 = arith.constant 0 : index
    %18 = vector.load %arg5[%c0_10, %c0_11] : memref<1x512xf32, #tpu.memory_space<vmem>>, vector<1x512xf32>
    %19 = vector.broadcast %18 : vector<1x512xf32> to vector<8x512xf32>
    %20 = arith.addf %17, %19 : vector<8x512xf32>
    %cst_12 = arith.constant dense<0.000000e+00> : vector<512xf32>
    %21 = vector.multi_reduction <add>, %20, %cst_12 [0] : vector<8x512xf32> to vector<512xf32>
    %22 = vector.shape_cast %21 : vector<512xf32> to vector<1x512xf32>
    %23 = arith.mulf %20, %20 : vector<8x512xf32>
    %cst_13 = arith.constant dense<0.000000e+00> : vector<512xf32>
    %24 = vector.multi_reduction <add>, %23, %cst_13 [0] : vector<8x512xf32> to vector<512xf32>
    %25 = vector.shape_cast %24 : vector<512xf32> to vector<1x512xf32>
    %cst_14 = arith.constant 0.000000e+00 : f32
    %26 = vector.broadcast %cst_14 : f32 to vector<6x512xf32>
    %27 = tpu.concatenate %22, %25, %26 in 0 : vector<1x512xf32>, vector<1x512xf32>, vector<6x512xf32> -> vector<8x512xf32>
    %28 = vector.shape_cast %27 : vector<8x512xf32> to vector<1x8x512xf32>
    %c0_15 = arith.constant 0 : index
    %c0_16 = arith.constant 0 : index
    %c0_17 = arith.constant 0 : index
    %29 = vector.load %arg7[%c0_15, %c0_16, %c0_17] : memref<1x8x512xf32, #tpu.memory_space<vmem>>, vector<1x8x512xf32>
    tpu.vector_store %arg7[%c0_15, %c0_16, %c0_17], %28 {strides = array<i32>} : memref<1x8x512xf32, #tpu.memory_space<vmem>>, vector<1x8x512xf32>,
    %30 = arith.truncf %20 : vector<8x512xf32> to vector<8x512xbf16>
    %c0_18 = arith.constant 0 : index
    %c0_19 = arith.constant 0 : index
    %31 = vector.load %arg6[%c0_18, %c0_19] : memref<8x512xbf16, #tpu.memory_space<vmem>>, vector<8x512xbf16>
    tpu.vector_store %arg6[%c0_18, %c0_19], %30 {strides = array<i32>} : memref<8x512xbf16, #tpu.memory_space<vmem>>, vector<8x512xbf16>,
    return
  }
  func.func @transform_0(%arg0: i32) -> (i32, i32) {
    %c0_i32 = arith.constant 0 : i32
    %c0_i32_0 = arith.constant 0 : i32
    return %arg0, %c0_i32 : i32, i32
  }
  func.func @transform_1(%arg0: i32) -> (i32, i32) {
    %c0_i32 = arith.constant 0 : i32
    %c0_i32_0 = arith.constant 0 : i32
    %c0_i32_1 = arith.constant 0 : i32
    return %c0_i32, %c0_i32_0 : i32, i32
  }
  func.func @transform_2(%arg0: i32) -> (i32, i32) {
    %c0_i32 = arith.constant 0 : i32
    %c0_i32_0 = arith.constant 0 : i32
    %c0_i32_1 = arith.constant 0 : i32
    return %c0_i32, %c0_i32_0 : i32, i32
  }
  func.func @transform_3(%arg0: i32) -> (i32, i32) {
    %c0_i32 = arith.constant 0 : i32
    %c0_i32_0 = arith.constant 0 : i32
    %c0_i32_1 = arith.constant 0 : i32
    return %c0_i32, %c0_i32_0 : i32, i32
  }
  func.func @transform_4(%arg0: i32) -> (i32, i32) {
    %c0_i32 = arith.constant 0 : i32
    %c0_i32_0 = arith.constant 0 : i32
    %c0_i32_1 = arith.constant 0 : i32
    return %c0_i32, %c0_i32_0 : i32, i32
  }
  func.func @transform_5(%arg0: i32) -> (i32, i32) {
    %c0_i32 = arith.constant 0 : i32
    %c0_i32_0 = arith.constant 0 : i32
    return %arg0, %c0_i32 : i32, i32
  }
  func.func @transform_6(%arg0: i32) -> (i32, i32, i32) {
    %c0_i32 = arith.constant 0 : i32
    %c0_i32_0 = arith.constant 0 : i32
    %c0_i32_1 = arith.constant 0 : i32
    return %arg0, %c0_i32, %c0_i32_0 : i32, i32, i32
  }
}

</mosaic_0001>

<llo_original>
// kernel: deepae_forward.3
$region0: #{deepae_forward.3}
  #allocation0 [shape = 'u32[]', space=smem, size = 0x4, offset = 0x4, fixed_abs, tag = 'smem constant byte address 0x4 - core index']
  #allocation1 [shape = 'u32[144,128]{1,0:T(1,128)}', space=vmem, size = 0x12000, scoped, tag = 'internal scratch']
  %s0 = inlined_call_operand.vmem [shape: bf16[8,128], index: 0, kind: input, shape index: {}]
  %s1 = inlined_call_operand.hbm [shape: bf16[128,512], index: 1, kind: input, shape index: {}]
  %s2 = inlined_call_operand.hbm [shape: f32[1,512], index: 2, kind: input, shape index: {}]
  %s3 = inlined_call_operand.vmem [shape: bf16[8,512], index: 3, kind: output, shape index: {0}]
  %s4 = inlined_call_operand.vmem [shape: f32[1,8,512], index: 4, kind: output, shape index: {1}]
  %5 = xla_tuple %s3, %s4
  %s6 = sld [smem:[#allocation0]]
  $region38: #{deepae_forward.3} parent=0
    _
  %s8 = ssub.s32 1, %s6
  %s9 = scalar_select 0, %s8, %s6
  $region1: #{deepae_forward.3} parent=0
    #allocation2 [shape = 'u8[131072]{0}', space=vmem, size = 0x20000, scoped, tag = 'input window, operand 1, single buffered']
    #allocation3 [shape = 's32[1]{0}', space=sflag, size = 0x4, scoped, tag = 'scoped memory for deepae_forward.3']
    #allocation4 [shape = 'u8[2048]{0}', space=vmem, size = 0x800, scoped, tag = 'input window, operand 2, single buffered']
    #allocation5 [shape = 's32[1]{0}', space=sflag, size = 0x4, scoped, tag = 'scoped memory for deepae_forward.3']
    %10 = vsyncpa [#allocation3], 0
    %11 = vsyncpa [#allocation5], 0
    // Predicated region
    $region2: #{deepae_forward.3} parent=1 // pred_check
      _
    $region3: #{deepae_forward.3} parent=1 // pred_check_branch
      %13 = sbr.rel (0) target = $region5
    $region4: #{deepae_forward.3} parent=1 // pred_region
      _
    $region5: #{deepae_forward.3} parent=1 // pred_fallthru
      _
    // Predicated region
    $region6: #{deepae_forward.3} parent=1 // pred_check
      _
    $region7: #{deepae_forward.3} parent=1 // pred_check_branch
      %15 = sbr.rel (0) target = $region9
    $region8: #{deepae_forward.3} parent=1 // pred_region
      %s17 = ssub.s32 4096, 4096
      %18 = vsyncadd [#allocation3], %s17
      %s19 = sshll.u32 [#allocation2], 4
      %s20 = int_to_ptr.vmem [resolvable:$true] %s19
      %25 = dma.hbm_to_vmem [thread:$0]  %s1, 4096, %s20, [#allocation3], 256, 256, 16
    $region9: #{deepae_forward.3} parent=1 // pred_fallthru
      _
    // Predicated region
    $region10: #{deepae_forward.3} parent=1 // pred_check
      _
    $region11: #{deepae_forward.3} parent=1 // pred_check_branch
      %27 = sbr.rel (0) target = $region13
    $region12: #{deepae_forward.3} parent=1 // pred_region
      %s29 = ssub.s32 64, 64
      %30 = vsyncadd [#allocation5], %s29
      %s32 = sshll.u32 [#allocation4], 4
      %s33 = int_to_ptr.vmem [resolvable:$true] %s32
      %35 = dma.hbm_to_vmem [thread:$0]  %s2, 64, %s33, [#allocation5]
    $region13: #{deepae_forward.3} parent=1 // pred_fallthru
      _
    // Predicated region
    $region14: #{deepae_forward.3} parent=1 // pred_check
      _
    $region15: #{deepae_forward.3} parent=1 // pred_check_branch
      %37 = sbr.rel (0) target = $region17
    $region16: #{deepae_forward.3} parent=1 // pred_region
      %38 = dma.done [#allocation3], 4096
    $region17: #{deepae_forward.3} parent=1 // pred_fallthru
      _
    // Predicated region
    $region18: #{deepae_forward.3} parent=1 // pred_check
      _
    $region19: #{deepae_forward.3} parent=1 // pred_check_branch
      %40 = sbr.rel (0) target = $region21
    $region20: #{deepae_forward.3} parent=1 // pred_region
      %41 = dma.done [#allocation5], 64
    $region21: #{deepae_forward.3} parent=1 // pred_fallthru
      _
    %v43 = vld [vmem:[%s0] sm:$0xf]
    %v44 = vld [vmem:[#allocation2] sm:$0xff]
    %v45 = vld [vmem:[#allocation2 + $0x8] sm:$0xff]
    %v46 = vld [vmem:[#allocation2 + $0x10] sm:$0xff]
    %v47 = vld [vmem:[#allocation2 + $0x18] sm:$0xff]
    %v48 = vld [vmem:[#allocation2 + $0x20] sm:$0xff]
    %v49 = vld [vmem:[#allocation2 + $0x28] sm:$0xff]
    %v50 = vld [vmem:[#allocation2 + $0x30] sm:$0xff]
    %v51 = vld [vmem:[#allocation2 + $0x38] sm:$0xff]
    %v52 = vld [vmem:[#allocation2 + $0x40] sm:$0xff]
    %v53 = vld [vmem:[#allocation2 + $0x48] sm:$0xff]
    %v54 = vld [vmem:[#allocation2 + $0x50] sm:$0xff]
    %v55 = vld [vmem:[#allocation2 + $0x58] sm:$0xff]
    %v56 = vld [vmem:[#allocation2 + $0x60] sm:$0xff]
    %v57 = vld [vmem:[#allocation2 + $0x68] sm:$0xff]
    %v58 = vld [vmem:[#allocation2 + $0x70] sm:$0xff]
    %v59 = vld [vmem:[#allocation2 + $0x78] sm:$0xff]
    %v60 = vld [vmem:[#allocation2 + $0x80] sm:$0xff]
    %v61 = vld [vmem:[#allocation2 + $0x88] sm:$0xff]
    %v62 = vld [vmem:[#allocation2 + $0x90] sm:$0xff]
    %v63 = vld [vmem:[#allocation2 + $0x98] sm:$0xff]
    %v64 = vld [vmem:[#allocation2 + $0xa0] sm:$0xff]
    %v65 = vld [vmem:[#allocation2 + $0xa8] sm:$0xff]
    %v66 = vld [vmem:[#allocation2 + $0xb0] sm:$0xff]
    %v67 = vld [vmem:[#allocation2 + $0xb8] sm:$0xff]
    %v68 = vld [vmem:[#allocation2 + $0xc0] sm:$0xff]
    %v69 = vld [vmem:[#allocation2 + $0xc8] sm:$0xff]
    %v70 = vld [vmem:[#allocation2 + $0xd0] sm:$0xff]
    %v71 = vld [vmem:[#allocation2 + $0xd8] sm:$0xff]
    %v72 = vld [vmem:[#allocation2 + $0xe0] sm:$0xff]
    %v73 = vld [vmem:[#allocation2 + $0xe8] sm:$0xff]
    %v74 = vld [vmem:[#allocation2 + $0xf0] sm:$0xff]
    %v75 = vld [vmem:[#allocation2 + $0xf8] sm:$0xff]
    %v76 = vld [vmem:[#allocation4] sm:$0xf]
    %v78 = vlaneseq
    %v79 = vshrl.u32 %v78, 7
    %v80 = vsub.s32 0, %v79
    %v81 = vrot.slane %v76, %v80
    %v82 = vlaneseq
    %v83 = vshrl.u32 %v82, 7
    %v84 = vsub.s32 1, %v83
    %v85 = vrot.slane %v76, %v84
    %v86 = vlaneseq
    %v87 = vshrl.u32 %v86, 7
    %v88 = vsub.s32 2, %v87
    %v89 = vrot.slane %v76, %v88
    %v90 = vlaneseq
    %v91 = vshrl.u32 %v90, 7
    %v92 = vsub.s32 3, %v91
    %v93 = vrot.slane %v76, %v92
    %v130 = vunpack.c.l.b16 %v44
    %v131 = vunpack.c.h.b16 %v44
    %v132 = vunpack.c.l.b16 %v45
    %v133 = vunpack.c.h.b16 %v45
    %v134 = vunpack.c.l.b16 %v46
    %v135 = vunpack.c.h.b16 %v46
    %v136 = vunpack.c.l.b16 %v47
    %v137 = vunpack.c.h.b16 %v47
    %v138 = vunpack.c.l.b16 %v48
    %v139 = vunpack.c.h.b16 %v48
    %v140 = vunpack.c.l.b16 %v49
    %v141 = vunpack.c.h.b16 %v49
    %v142 = vunpack.c.l.b16 %v50
    %v143 = vunpack.c.h.b16 %v50
    %v144 = vunpack.c.l.b16 %v51
    %v145 = vunpack.c.h.b16 %v51
    %v146 = vunpack.c.l.b16 %v52
    %v147 = vunpack.c.h.b16 %v52
    %v148 = vunpack.c.l.b16 %v53
    %v149 = vunpack.c.h.b16 %v53
    %v150 = vunpack.c.l.b16 %v54
    %v151 = vunpack.c.h.b16 %v54
    %v152 = vunpack.c.l.b16 %v55
    %v153 = vunpack.c.h.b16 %v55
    %v154 = vunpack.c.l.b16 %v56
    %v155 = vunpack.c.h.b16 %v56
    %v156 = vunpack.c.l.b16 %v57
    %v157 = vunpack.c.h.b16 %v57
    %v158 = vunpack.c.l.b16 %v58
    %v159 = vunpack.c.h.b16 %v58
    %v160 = vunpack.c.l.b16 %v59
    %v161 = vunpack.c.h.b16 %v59
    %v162 = vunpack.c.l.b16 %v60
    %v163 = vunpack.c.h.b16 %v60
    %v164 = vunpack.c.l.b16 %v61
    %v165 = vunpack.c.h.b16 %v61
    %v166 = vunpack.c.l.b16 %v62
    %v167 = vunpack.c.h.b16 %v62
    %v168 = vunpack.c.l.b16 %v63
    %v169 = vunpack.c.h.b16 %v63
    %v170 = vunpack.c.l.b16 %v64
    %v171 = vunpack.c.h.b16 %v64
    %v172 = vunpack.c.l.b16 %v65
    %v173 = vunpack.c.h.b16 %v65
    %v174 = vunpack.c.l.b16 %v66
    %v175 = vunpack.c.h.b16 %v66
    %v176 = vunpack.c.l.b16 %v67
    %v177 = vunpack.c.h.b16 %v67
    %v178 = vunpack.c.l.b16 %v68
    %v179 = vunpack.c.h.b16 %v68
    %v180 = vunpack.c.l.b16 %v69
    %v181 = vunpack.c.h.b16 %v69
    %v182 = vunpack.c.l.b16 %v70
    %v183 = vunpack.c.h.b16 %v70
    %v184 = vunpack.c.l.b16 %v71
    %v185 = vunpack.c.h.b16 %v71
    %v186 = vunpack.c.l.b16 %v72
    %v187 = vunpack.c.h.b16 %v72
    %v188 = vunpack.c.l.b16 %v73
    %v189 = vunpack.c.h.b16 %v73
    %v190 = vunpack.c.l.b16 %v74
    %v191 = vunpack.c.h.b16 %v74
    %v192 = vunpack.c.l.b16 %v75
    %v193 = vunpack.c.h.b16 %v75
    %v194 = vpack.c.b16 %v134, %v130
    %v195 = vpack.c.b16 %v135, %v131
    %v196 = vpack.c.b16 %v136, %v132
    %v197 = vpack.c.b16 %v137, %v133
    %v198 = vpack.c.b16 %v142, %v138
    %v199 = vpack.c.b16 %v143, %v139
    %v200 = vpack.c.b16 %v144, %v140
    %v201 = vpack.c.b16 %v145, %v141
    %v202 = vpack.c.b16 %v150, %v146
    %v203 = vpack.c.b16 %v151, %v147
    %v204 = vpack.c.b16 %v152, %v148
    %v205 = vpack.c.b16 %v153, %v149
    %v206 = vpack.c.b16 %v158, %v154
    %v207 = vpack.c.b16 %v159, %v155
    %v208 = vpack.c.b16 %v160, %v156
    %v209 = vpack.c.b16 %v161, %v157
    %v210 = vpack.c.b16 %v166, %v162
    %v211 = vpack.c.b16 %v167, %v163
    %v212 = vpack.c.b16 %v168, %v164
    %v213 = vpack.c.b16 %v169, %v165
    %v214 = vpack.c.b16 %v174, %v170
    %v215 = vpack.c.b16 %v175, %v171
    %v216 = vpack.c.b16 %v176, %v172
    %v217 = vpack.c.b16 %v177, %v173
    %v218 = vpack.c.b16 %v182, %v178
    %v219 = vpack.c.b16 %v183, %v179
    %v220 = vpack.c.b16 %v184, %v180
    %v221 = vpack.c.b16 %v185, %v181
    %v222 = vpack.c.b16 %v190, %v186
    %v223 = vpack.c.b16 %v191, %v187
    %v224 = vpack.c.b16 %v192, %v188
    %v225 = vpack.c.b16 %v193, %v189
    %258 = vmatprep.subr.bf16.mxu0 %v195
    %259 = vmatpush1.bf16.msra.mxu0 %v194
    %260 = vmatprep.subr.bf16.mxu0 %v199
    %261 = vmatpush1.bf16.msra.mxu0 %v198
    %262 = vmatprep.subr.bf16.mxu0 %v203
    %263 = vmatpush1.bf16.msra.mxu0 %v202
    %264 = vmatprep.subr.bf16.mxu0 %v207
    %265 = vmatpush1.bf16.msra.mxu0 %v206
    %266 = vmatprep.subr.bf16.mxu0 %v211
    %267 = vmatpush1.bf16.msra.mxu0 %v210
    %268 = vmatprep.subr.bf16.mxu0 %v215
    %269 = vmatpush1.bf16.msra.mxu0 %v214
    %270 = vmatprep.subr.bf16.mxu0 %v219
    %271 = vmatpush1.bf16.msra.mxu0 %v218
    %272 = vmatprep.subr.bf16.mxu0 %v223
    %273 = vmatpush1.bf16.msra.mxu0 %v222
    %274 = vmatprep.subr.bf16.mxu0 0
    %275 = vmatpush1.bf16.msra.mxu0 0
    %276 = vmatprep.subr.bf16.mxu0 0
    %277 = vmatpush1.bf16.msra.mxu0 0
    %278 = vmatprep.subr.bf16.mxu0 0
    %279 = vmatpush1.bf16.msra.mxu0 0
    %280 = vmatprep.subr.bf16.mxu0 0
    %281 = vmatpush1.bf16.msra.mxu0 0
    %282 = vmatprep.subr.bf16.mxu0 0
    %283 = vmatpush1.bf16.msra.mxu0 0
    %284 = vmatprep.subr.bf16.mxu0 0
    %285 = vmatpush1.bf16.msra.mxu0 0
    %286 = vmatprep.subr.bf16.mxu0 0
    %287 = vmatpush1.bf16.msra.mxu0 0
    %288 = vmatprep.subr.bf16.mxu0 0
    %289 = vmatpush1.bf16.msra.mxu0 0
    %290 = vmatprep.mubr.bf16.mxu0 0
    %291 = vmatmul.mubr.bf16.gmra.mrb[0].mxu0 %v43
    %v292 = vpop.f32.mrb[0].mxu0
    %v293 = vadd.f32 %v81, %v292
    %v294 = vpop.f32.mrb[0].mxu0
    %v295 = vadd.f32 %v85, %v294
    %v296 = vpop.f32.mrb[0].mxu0
    %v297 = vpop.f32.mrb[0].mxu0
    %298 = vdwg.mxu0
    %299 = vmatprep.subr.bf16.mxu0 %v197
    %300 = vmatpush1.bf16.msra.mxu0 %v196
    %301 = vmatprep.subr.bf16.mxu0 %v201
    %302 = vmatpush1.bf16.msra.mxu0 %v200
    %303 = vmatprep.subr.bf16.mxu0 %v205
    %304 = vmatpush1.bf16.msra.mxu0 %v204
    %305 = vmatprep.subr.bf16.mxu0 %v209
    %306 = vmatpush1.bf16.msra.mxu0 %v208
    %307 = vmatprep.subr.bf16.mxu0 %v213
    %308 = vmatpush1.bf16.msra.mxu0 %v212
    %309 = vmatprep.subr.bf16.mxu0 %v217
    %310 = vmatpush1.bf16.msra.mxu0 %v216
    %311 = vmatprep.subr.bf16.mxu0 %v221
    %312 = vmatpush1.bf16.msra.mxu0 %v220
    %313 = vmatprep.subr.bf16.mxu0 %v225
    %314 = vmatpush1.bf16.msra.mxu0 %v224
    %315 = vmatprep.subr.bf16.mxu0 0
    %316 = vmatpush1.bf16.msra.mxu0 0
    %317 = vmatprep.subr.bf16.mxu0 0
    %318 = vmatpush1.bf16.msra.mxu0 0
    %319 = vmatprep.subr.bf16.mxu0 0
    %320 = vmatpush1.bf16.msra.mxu0 0
    %321 = vmatprep.subr.bf16.mxu0 0
    %322 = vmatpush1.bf16.msra.mxu0 0
    %323 = vmatprep.subr.bf16.mxu0 0
    %324 = vmatpush1.bf16.msra.mxu0 0
    %325 = vmatprep.subr.bf16.mxu0 0
    %326 = vmatpush1.bf16.msra.mxu0 0
    %327 = vmatprep.subr.bf16.mxu0 0
    %328 = vmatpush1.bf16.msra.mxu0 0
    %329 = vmatprep.subr.bf16.mxu0 0
    %330 = vmatpush1.bf16.msra.mxu0 0
    %331 = vmatprep.mubr.bf16.mxu0 0
    %332 = vmatmul.mubr.bf16.gmra.mrb[0].mxu0 %v43
    %v333 = vpop.f32.mrb[0].mxu0
    %v334 = vadd.f32 %v89, %v333
    %v335 = vpop.f32.mrb[0].mxu0
    %v336 = vadd.f32 %v93, %v335
    %v337 = vpop.f32.mrb[0].mxu0
    %v338 = vpop.f32.mrb[0].mxu0
    %339 = vdwg.mxu0
    %v340 = vrot.slane %v293, 4
    %v341 = vadd.f32 %v293, %v340
    %v342 = vrot.slane %v341, 2
    %v343 = vadd.f32 %v341, %v342
    %v344 = vrot.slane %v343, 1
    %v345 = vadd.f32 %v343, %v344
    %v346 = vrot.slane %v295, 4
    %v347 = vadd.f32 %v295, %v346
    %v348 = vrot.slane %v347, 2
    %v349 = vadd.f32 %v347, %v348
    %v350 = vrot.slane %v349, 1
    %v351 = vadd.f32 %v349, %v350
    %v352 = vrot.slane %v334, 4
    %v353 = vadd.f32 %v334, %v352
    %v354 = vrot.slane %v353, 2
    %v355 = vadd.f32 %v353, %v354
    %v356 = vrot.slane %v355, 1
    %v357 = vadd.f32 %v355, %v356
    %v358 = vrot.slane %v336, 4
    %v359 = vadd.f32 %v336, %v358
    %v360 = vrot.slane %v359, 2
    %v361 = vadd.f32 %v359, %v360
    %v362 = vrot.slane %v361, 1
    %v363 = vadd.f32 %v361, %v362
    %v364 = vmul.f32 %v293, %v293
    %v365 = vmul.f32 %v295, %v295
    %v366 = vmul.f32 %v334, %v334
    %v367 = vmul.f32 %v336, %v336
    %v368 = vrot.slane %v364, 4
    %v369 = vadd.f32 %v364, %v368
    %v370 = vrot.slane %v369, 2
    %v371 = vadd.f32 %v369, %v370
    %v372 = vrot.slane %v371, 1
    %v373 = vadd.f32 %v371, %v372
    %v374 = vrot.slane %v365, 4
    %v375 = vadd.f32 %v365, %v374
    %v376 = vrot.slane %v375, 2
    %v377 = vadd.f32 %v375, %v376
    %v378 = vrot.slane %v377, 1
    %v379 = vadd.f32 %v377, %v378
    %v380 = vrot.slane %v366, 4
    %v381 = vadd.f32 %v366, %v380
    %v382 = vrot.slane %v381, 2
    %v383 = vadd.f32 %v381, %v382
    %v384 = vrot.slane %v383, 1
    %v385 = vadd.f32 %v383, %v384
    %v386 = vrot.slane %v367, 4
    %v387 = vadd.f32 %v367, %v386
    %v388 = vrot.slane %v387, 2
    %v389 = vadd.f32 %v387, %v388
    %v390 = vrot.slane %v389, 1
    %v391 = vadd.f32 %v389, %v390
    %vm392 = vcmask 1040384
    %v393 = vsel %vm392, %v345, %v373
    %v394 = vsel %vm392, %v351, %v379
    %v395 = vsel %vm392, %v357, %v385
    %v396 = vsel %vm392, %v363, %v391
    %vm397 = vcmask 1041408
    %v398 = vsel %vm397, %v393, 0.0
    %v399 = vsel %vm397, %v394, 0.0
    %v400 = vsel %vm397, %v395, 0.0
    %v401 = vsel %vm397, %v396, 0.0
    %402 = vst [vmem:[%s4] sm:$0xff] %v398
    %403 = vst [vmem:[%s4 + $0x8] sm:$0xff] %v399
    %404 = vst [vmem:[%s4 + $0x10] sm:$0xff] %v400
    %405 = vst [vmem:[%s4 + $0x18] sm:$0xff] %v401
    %v406 = vpack.c.bf16 %v293, %v293
    %v407 = vpack.c.bf16 %v295, %v295
    %v408 = vpack.c.bf16 %v334, %v334
    %v409 = vpack.c.bf16 %v336, %v336
    %v414 = vunpack.c.l.b16 %v406
    %v415 = vunpack.c.l.b16 %v407
    %v416 = vunpack.c.l.b16 %v408
    %v417 = vunpack.c.l.b16 %v409
    %v418 = vpack.c.b16 %v415, %v414
    %v419 = vpack.c.b16 %v417, %v416
    %422 = vst [vmem:[%s3] sm:$0xff] %v418
    %423 = vst [vmem:[%s3 + $0x8] sm:$0xff] %v419
    // Predicated region
    $region22: #{deepae_forward.3} parent=1 // pred_check
      _
    $region23: #{deepae_forward.3} parent=1 // pred_check_branch
      %425 = sbr.rel (0) target = $region25
    $region24: #{deepae_forward.3} parent=1 // pred_region
      _
    $region25: #{deepae_forward.3} parent=1 // pred_fallthru
      _
    // Predicated region
    $region26: #{deepae_forward.3} parent=1 // pred_check
      _
    $region27: #{deepae_forward.3} parent=1 // pred_check_branch
      %427 = sbr.rel (0) target = $region29
    $region28: #{deepae_forward.3} parent=1 // pred_region
      _
    $region29: #{deepae_forward.3} parent=1 // pred_fallthru
      _
    // Predicated region
    $region30: #{deepae_forward.3} parent=1 // pred_check
      _
    $region31: #{deepae_forward.3} parent=1 // pred_check_branch
      %429 = sbr.rel (0) target = $region33
    $region32: #{deepae_forward.3} parent=1 // pred_region
      _
    $region33: #{deepae_forward.3} parent=1 // pred_fallthru
      _
    // Predicated region
    $region34: #{deepae_forward.3} parent=1 // pred_check
      _
    $region35: #{deepae_forward.3} parent=1 // pred_check_branch
      %431 = sbr.rel (0) target = $region37
    $region36: #{deepae_forward.3} parent=1 // pred_region
      _
    $region37: #{deepae_forward.3} parent=1 // pred_fallthru
      _
    %432 = vsyncpa [#allocation3], 1
    %433 = vsyncpa [#allocation5], 1

// kernel: deepae_forward.4
$region0: #{deepae_forward.4}
  #allocation0 [shape = 'u32[]', space=smem, size = 0x4, offset = 0x4, fixed_abs, tag = 'smem constant byte address 0x4 - core index']
  #allocation1 [shape = 'u32[144,128]{1,0:T(1,128)}', space=vmem, size = 0x12000, scoped, tag = 'internal scratch']
  %s0 = inlined_call_operand.vmem [shape: bf16[8,512], index: 0, kind: input, shape index: {}]
  %s1 = inlined_call_operand.vmem [shape: f32[1,512], index: 1, kind: input, shape index: {}]
  %s2 = inlined_call_operand.vmem [shape: f32[1,512], index: 2, kind: input, shape index: {}]
  %s3 = inlined_call_operand.hbm [shape: bf16[512,512], index: 3, kind: input, shape index: {}]
  %s4 = inlined_call_operand.hbm [shape: f32[1,512], index: 4, kind: input, shape index: {}]
  %s5 = inlined_call_operand.vmem [shape: bf16[8,512], index: 5, kind: output, shape index: {0}]
  %s6 = inlined_call_operand.vmem [shape: f32[1,8,512], index: 6, kind: output, shape index: {1}]
  %7 = xla_tuple %s5, %s6
  %s8 = sld [smem:[#allocation0]]
  $region46: #{deepae_forward.4} parent=0
    _
  %s10 = ssub.s32 1, %s8
  %s11 = scalar_select 0, %s10, %s8
  $region1: #{deepae_forward.4} parent=0
    #allocation2 [shape = 'u8[524288]{0}', space=vmem, size = 0x80000, scoped, tag = 'input window, operand 3, single buffered']
    #allocation3 [shape = 's32[1]{0}', space=sflag, size = 0x4, scoped, tag = 'scoped memory for deepae_forward.4']
    #allocation4 [shape = 'u8[2048]{0}', space=vmem, size = 0x800, scoped, tag = 'input window, operand 4, single buffered']
    #allocation5 [shape = 's32[1]{0}', space=sflag, size = 0x4, scoped, tag = 'scoped memory for deepae_forward.4']
    %12 = vsyncpa [#allocation3], 0
    %13 = vsyncpa [#allocation5], 0
    // Predicated region
    $region2: #{deepae_forward.4} parent=1 // pred_check
      _
    $region3: #{deepae_forward.4} parent=1 // pred_check_branch
      %15 = sbr.rel (0) target = $region5
    $region4: #{deepae_forward.4} parent=1 // pred_region
      _
    $region5: #{deepae_forward.4} parent=1 // pred_fallthru
      _
    // Predicated region
    $region6: #{deepae_forward.4} parent=1 // pred_check
      _
    $region7: #{deepae_forward.4} parent=1 // pred_check_branch
      %17 = sbr.rel (0) target = $region9
    $region8: #{deepae_forward.4} parent=1 // pred_region
      _
    $region9: #{deepae_forward.4} parent=1 // pred_fallthru
      _
    // Predicated region
    $region10: #{deepae_forward.4} parent=1 // pred_check
      _
    $region11: #{deepae_forward.4} parent=1 // pred_check_branch
      %19 = sbr.rel (0) target = $region13
    $region12: #{deepae_forward.4} parent=1 // pred_region
      _
    $region13: #{deepae_forward.4} parent=1 // pred_fallthru
      _
    // Predicated region
    $region14: #{deepae_forward.4} parent=1 // pred_check
      _
    $region15: #{deepae_forward.4} parent=1 // pred_check_branch
      %21 = sbr.rel (0) target = $region17
    $region16: #{deepae_forward.4} parent=1 // pred_region
      %s23 = ssub.s32 16384, 16384
      %24 = vsyncadd [#allocation3], %s23
      %s25 = sshll.u32 [#allocation2], 4
      %s26 = int_to_ptr.vmem [resolvable:$true] %s25
      %31 = dma.hbm_to_vmem [thread:$0]  %s3, 16384, %s26, [#allocation3], 256, 256, 16
    $region17: #{deepae_forward.4} parent=1 // pred_fallthru
      _
    // Predicated region
    $region18: #{deepae_forward.4} parent=1 // pred_check
      _
    $region19: #{deepae_forward.4} parent=1 // pred_check_branch
      %33 = sbr.rel (0) target = $region21
    $region20: #{deepae_forward.4} parent=1 // pred_region
      %s35 = ssub.s32 64, 64
      %36 = vsyncadd [#allocation5], %s35
      %s38 = sshll.u32 [#allocation4], 4
      %s39 = int_to_ptr.vmem [resolvable:$true] %s38
      %41 = dma.hbm_to_vmem [thread:$0]  %s4, 64, %s39, [#allocation5]
    $region21: #{deepae_forward.4} parent=1 // pred_fallthru
      _
    // Predicated region
    $region22: #{deepae_forward.4} parent=1 // pred_check
      _
    $region23: #{deepae_forward.4} parent=1 // pred_check_branch
      %43 = sbr.rel (0) target = $region25
    $region24: #{deepae_forward.4} parent=1 // pred_region
      %44 = dma.done [#allocation3], 16384
    $region25: #{deepae_forward.4} parent=1 // pred_fallthru
      _
    // Predicated region
    $region26: #{deepae_forward.4} parent=1 // pred_check
      _
    $region27: #{deepae_forward.4} parent=1 // pred_check_branch
      %46 = sbr.rel (0) target = $region29
    $region28: #{deepae_forward.4} parent=1 // pred_region
      %47 = dma.done [#allocation5], 64
    $region29: #{deepae_forward.4} parent=1 // pred_fallthru
      _
    %v48 = vld [vmem:[%s0] sm:$0xff]
    %v49 = vld [vmem:[%s0 + $0x8] sm:$0xff]
    %v50 = vunpack.c.l.bf16 %v48
    %v51 = vunpack.c.h.bf16 %v48
    %v52 = vunpack.c.l.bf16 %v49
    %v53 = vunpack.c.h.bf16 %v49
    %v54 = vld [vmem:[%s1] sm:$0xf]
    %v56 = vlaneseq
    %v57 = vshrl.u32 %v56, 7
    %v58 = vsub.s32 0, %v57
    %v59 = vrot.slane %v54, %v58
    %v60 = vlaneseq
    %v61 = vshrl.u32 %v60, 7
    %v62 = vsub.s32 1, %v61
    %v63 = vrot.slane %v54, %v62
    %v64 = vlaneseq
    %v65 = vshrl.u32 %v64, 7
    %v66 = vsub.s32 2, %v65
    %v67 = vrot.slane %v54, %v66
    %v68 = vlaneseq
    %v69 = vshrl.u32 %v68, 7
    %v70 = vsub.s32 3, %v69
    %v71 = vrot.slane %v54, %v70
    %v76 = vmul.f32 %v50, %v59
    %v77 = vmul.f32 %v51, %v63
    %v78 = vmul.f32 %v52, %v67
    %v79 = vmul.f32 %v53, %v71
    %v80 = vld [vmem:[%s2] sm:$0xf]
    %v82 = vlaneseq
    %v83 = vshrl.u32 %v82, 7
    %v84 = vsub.s32 0, %v83
    %v85 = vrot.slane %v80, %v84
    %v86 = vlaneseq
    %v87 = vshrl.u32 %v86, 7
    %v88 = vsub.s32 1, %v87
    %v89 = vrot.slane %v80, %v88
    %v90 = vlaneseq
    %v91 = vshrl.u32 %v90, 7
    %v92 = vsub.s32 2, %v91
    %v93 = vrot.slane %v80, %v92
    %v94 = vlaneseq
    %v95 = vshrl.u32 %v94, 7
    %v96 = vsub.s32 3, %v95
    %v97 = vrot.slane %v80, %v96
    %v102 = vadd.f32 %v76, %v85
    %v103 = vadd.f32 %v77, %v89
    %v104 = vadd.f32 %v78, %v93
    %v105 = vadd.f32 %v79, %v97
    %v106 = vmul.f32 %v102, 0.5
    %v107 = vmul.f32 %v103, 0.5
    %v108 = vmul.f32 %v104, 0.5
    %v109 = vmul.f32 %v105, 0.5
    %v110 = vtanh.pop %v106
    %v111 = vtanh.pop %v107
    %v112 = vtanh.pop %v108
    %v113 = vtanh.pop %v109
    %v114 = vadd.f32 %v110, 1.0
    %v115 = vadd.f32 %v111, 1.0
    %v116 = vadd.f32 %v112, 1.0
    %v117 = vadd.f32 %v113, 1.0
    %v118 = vmul.f32 %v114, 0.5
    %v119 = vmul.f32 %v115, 0.5
    %v120 = vmul.f32 %v116, 0.5
    %v121 = vmul.f32 %v117, 0.5
    %v122 = vpack.c.bf16 %v118, %v118
    %v123 = vpack.c.bf16 %v119, %v119
    %v124 = vpack.c.bf16 %v120, %v120
    %v125 = vpack.c.bf16 %v121, %v121
    %v126 = vld [vmem:[#allocation2] sm:$0xff]
    %v127 = vld [vmem:[#allocation2 + $0x8] sm:$0xff]
    %v128 = vld [vmem:[#allocation2 + $0x10] sm:$0xff]
    %v129 = vld [vmem:[#allocation2 + $0x18] sm:$0xff]
    %v130 = vld [vmem:[#allocation2 + $0x20] sm:$0xff]
    %v131 = vld [vmem:[#allocation2 + $0x28] sm:$0xff]
    %v132 = vld [vmem:[#allocation2 + $0x30] sm:$0xff]
    %v133 = vld [vmem:[#allocation2 + $0x38] sm:$0xff]
    %v134 = vld [vmem:[#allocation2 + $0x40] sm:$0xff]
    %v135 = vld [vmem:[#allocation2 + $0x48] sm:$0xff]
    %v136 = vld [vmem:[#allocation2 + $0x50] sm:$0xff]
    %v137 = vld [vmem:[#allocation2 + $0x58] sm:$0xff]
    %v138 = vld [vmem:[#allocation2 + $0x60] sm:$0xff]
    %v139 = vld [vmem:[#allocation2 + $0x68] sm:$0xff]
    %v140 = vld [vmem:[#allocation2 + $0x70] sm:$0xff]
    %v141 = vld [vmem:[#allocation2 + $0x78] sm:$0xff]
    %v142 = vld [vmem:[#allocation2 + $0x80] sm:$0xff]
    %v143 = vld [vmem:[#allocation2 + $0x88] sm:$0xff]
    %v144 = vld [vmem:[#allocation2 + $0x90] sm:$0xff]
    %v145 = vld [vmem:[#allocation2 + $0x98] sm:$0xff]
    %v146 = vld [vmem:[#allocation2 + $0xa0] sm:$0xff]
    %v147 = vld [vmem:[#allocation2 + $0xa8] sm:$0xff]
    %v148 = vld [vmem:[#allocation2 + $0xb0] sm:$0xff]
    %v149 = vld [vmem:[#allocation2 + $0xb8] sm:$0xff]
    %v150 = vld [vmem:[#allocation2 + $0xc0] sm:$0xff]
    %v151 = vld [vmem:[#allocation2 + $0xc8] sm:$0xff]
    %v152 = vld [vmem:[#allocation2 + $0xd0] sm:$0xff]
    %v153 = vld [vmem:[#allocation2 + $0xd8] sm:$0xff]
    %v154 = vld [vmem:[#allocation2 + $0xe0] sm:$0xff]
    %v155 = vld [vmem:[#allocation2 + $0xe8] sm:$0xff]
    %v156 = vld [vmem:[#allocation2 + $0xf0] sm:$0xff]
    %v157 = vld [vmem:[#allocation2 + $0xf8] sm:$0xff]
    %v158 = vld [vmem:[#allocation2 + $0x100] sm:$0xff]
    %v159 = vld [vmem:[#allocation2 + $0x108] sm:$0xff]
    %v160 = vld [vmem:[#allocation2 + $0x110] sm:$0xff]
    %v161 = vld [vmem:[#allocation2 + $0x118] sm:$0xff]
    %v162 = vld [vmem:[#allocation2 + $0x120] sm:$0xff]
    %v163 = vld [vmem:[#allocation2 + $0x128] sm:$0xff]
    %v164 = vld [vmem:[#allocation2 + $0x130] sm:$0xff]
    %v165 = vld [vmem:[#allocation2 + $0x138] sm:$0xff]
    %v166 = vld [vmem:[#allocation2 + $0x140] sm:$0xff]
    %v167 = vld [vmem:[#allocation2 + $0x148] sm:$0xff]
    %v168 = vld [vmem:[#allocation2 + $0x150] sm:$0xff]
    %v169 = vld [vmem:[#allocation2 + $0x158] sm:$0xff]
    %v170 = vld [vmem:[#allocation2 + $0x160] sm:$0xff]
    %v171 = vld [vmem:[#allocation2 + $0x168] sm:$0xff]
    %v172 = vld [vmem:[#allocation2 + $0x170] sm:$0xff]
    %v173 = vld [vmem:[#allocation2 + $0x178] sm:$0xff]
    %v174 = vld [vmem:[#allocation2 + $0x180] sm:$0xff]
    %v175 = vld [vmem:[#allocation2 + $0x188] sm:$0xff]
    %v176 = vld [vmem:[#allocation2 + $0x190] sm:$0xff]
    %v177 = vld [vmem:[#allocation2 + $0x198] sm:$0xff]
    %v178 = vld [vmem:[#allocation2 + $0x1a0] sm:$0xff]
    %v179 = vld [vmem:[#allocation2 + $0x1a8] sm:$0xff]
    %v180 = vld [vmem:[#allocation2 + $0x1b0] sm:$0xff]
    %v181 = vld [vmem:[#allocation2 + $0x1b8] sm:$0xff]
    %v182 = vld [vmem:[#allocation2 + $0x1c0] sm:$0xff]
    %v183 = vld [vmem:[#allocation2 + $0x1c8] sm:$0xff]
    %v184 = vld [vmem:[#allocation2 + $0x1d0] sm:$0xff]
    %v185 = vld [vmem:[#allocation2 + $0x1d8] sm:$0xff]
    %v186 = vld [vmem:[#allocation2 + $0x1e0] sm:$0xff]
    %v187 = vld [vmem:[#allocation2 + $0x1e8] sm:$0xff]
    %v188 = vld [vmem:[#allocation2 + $0x1f0] sm:$0xff]
    %v189 = vld [vmem:[#allocation2 + $0x1f8] sm:$0xff]
    %v190 = vld [vmem:[#allocation2 + $0x200] sm:$0xff]
    %v191 = vld [vmem:[#allocation2 + $0x208] sm:$0xff]
    %v192 = vld [vmem:[#allocation2 + $0x210] sm:$0xff]
    %v193 = vld [vmem:[#allocation2 + $0x218] sm:$0xff]
    %v194 = vld [vmem:[#allocation2 + $0x220] sm:$0xff]
    %v195 = vld [vmem:[#allocation2 + $0x228] sm:$0xff]
    %v196 = vld [vmem:[#allocation2 + $0x230] sm:$0xff]
    %v197 = vld [vmem:[#allocation2 + $0x238] sm:$0xff]
    %v198 = vld [vmem:[#allocation2 + $0x240] sm:$0xff]
    %v199 = vld [vmem:[#allocation2 + $0x248] sm:$0xff]
    %v200 = vld [vmem:[#allocation2 + $0x250] sm:$0xff]
    %v201 = vld [vmem:[#allocation2 + $0x258] sm:$0xff]
    %v202 = vld [vmem:[#allocation2 + $0x260] sm:$0xff]
    %v203 = vld [vmem:[#allocation2 + $0x268] sm:$0xff]
    %v204 = vld [vmem:[#allocation2 + $0x270] sm:$0xff]
    %v205 = vld [vmem:[#allocation2 + $0x278] sm:$0xff]
    %v206 = vld [vmem:[#allocation2 + $0x280] sm:$0xff]
    %v207 = vld [vmem:[#allocation2 + $0x288] sm:$0xff]
    %v208 = vld [vmem:[#allocation2 + $0x290] sm:$0xff]
    %v209 = vld [vmem:[#allocation2 + $0x298] sm:$0xff]
    %v210 = vld [vmem:[#allocation2 + $0x2a0] sm:$0xff]
    %v211 = vld [vmem:[#allocation2 + $0x2a8] sm:$0xff]
    %v212 = vld [vmem:[#allocation2 + $0x2b0] sm:$0xff]
    %v213 = vld [vmem:[#allocation2 + $0x2b8] sm:$0xff]
    %v214 = vld [vmem:[#allocation2 + $0x2c0] sm:$0xff]
    %v215 = vld [vmem:[#allocation2 + $0x2c8] sm:$0xff]
    %v216 = vld [vmem:[#allocation2 + $0x2d0] sm:$0xff]
    %v217 = vld [vmem:[#allocation2 + $0x2d8] sm:$0xff]
    %v218 = vld [vmem:[#allocation2 + $0x2e0] sm:$0xff]
    %v219 = vld [vmem:[#allocation2 + $0x2e8] sm:$0xff]
    %v220 = vld [vmem:[#allocation2 + $0x2f0] sm:$0xff]
    %v221 = vld [vmem:[#allocation2 + $0x2f8] sm:$0xff]
    %v222 = vld [vmem:[#allocation2 + $0x300] sm:$0xff]
    %v223 = vld [vmem:[#allocation2 + $0x308] sm:$0xff]
    %v224 = vld [vmem:[#allocation2 + $0x310] sm:$0xff]
    %v225 = vld [vmem:[#allocation2 + $0x318] sm:$0xff]
    %v226 = vld [vmem:[#allocation2 + $0x320] sm:$0xff]
    %v227 = vld [vmem:[#allocation2 + $0x328] sm:$0xff]
    %v228 = vld [vmem:[#allocation2 + $0x330] sm:$0xff]
    %v229 = vld [vmem:[#allocation2 + $0x338] sm:$0xff]
    %v230 = vld [vmem:[#allocation2 + $0x340] sm:$0xff]
    %v231 = vld [vmem:[#allocation2 + $0x348] sm:$0xff]
    %v232 = vld [vmem:[#allocation2 + $0x350] sm:$0xff]
    %v233 = vld [vmem:[#allocation2 + $0x358] sm:$0xff]
    %v234 = vld [vmem:[#allocation2 + $0x360] sm:$0xff]
    %v235 = vld [vmem:[#allocation2 + $0x368] sm:$0xff]
    %v236 = vld [vmem:[#allocation2 + $0x370] sm:$0xff]
    %v237 = vld [vmem:[#allocation2 + $0x378] sm:$0xff]
    %v238 = vld [vmem:[#allocation2 + $0x380] sm:$0xff]
    %v239 = vld [vmem:[#allocation2 + $0x388] sm:$0xff]
    %v240 = vld [vmem:[#allocation2 + $0x390] sm:$0xff]
    %v241 = vld [vmem:[#allocation2 + $0x398] sm:$0xff]
    %v242 = vld [vmem:[#allocation2 + $0x3a0] sm:$0xff]
    %v243 = vld [vmem:[#allocation2 + $0x3a8] sm:$0xff]
    %v244 = vld [vmem:[#allocation2 + $0x3b0] sm:$0xff]
    %v245 = vld [vmem:[#allocation2 + $0x3b8] sm:$0xff]
    %v246 = vld [vmem:[#allocation2 + $0x3c0] sm:$0xff]
    %v247 = vld [vmem:[#allocation2 + $0x3c8] sm:$0xff]
    %v248 = vld [vmem:[#allocation2 + $0x3d0] sm:$0xff]
    %v249 = vld [vmem:[#allocation2 + $0x3d8] sm:$0xff]
    %v250 = vld [vmem:[#allocation2 + $0x3e0] sm:$0xff]
    %v251 = vld [vmem:[#allocation2 + $0x3e8] sm:$0xff]
    %v252 = vld [vmem:[#allocation2 + $0x3f0] sm:$0xff]
    %v253 = vld [vmem:[#allocation2 + $0x3f8] sm:$0xff]
    %v254 = vld [vmem:[#allocation4] sm:$0xf]
    %v256 = vlaneseq
    %v257 = vshrl.u32 %v256, 7
    %v258 = vsub.s32 0, %v257
    %v259 = vrot.slane %v254, %v258
    %v260 = vlaneseq
    %v261 = vshrl.u32 %v260, 7
    %v262 = vsub.s32 1, %v261
    %v263 = vrot.slane %v254, %v262
    %v264 = vlaneseq
    %v265 = vshrl.u32 %v264, 7
    %v266 = vsub.s32 2, %v265
    %v267 = vrot.slane %v254, %v266
    %v268 = vlaneseq
    %v269 = vshrl.u32 %v268, 7
    %v270 = vsub.s32 3, %v269
    %v271 = vrot.slane %v254, %v270
    %v404 = vunpack.c.l.b16 %v126
    %v405 = vunpack.c.h.b16 %v126
    %v406 = vunpack.c.l.b16 %v127
    %v407 = vunpack.c.h.b16 %v127
    %v408 = vunpack.c.l.b16 %v128
    %v409 = vunpack.c.h.b16 %v128
    %v410 = vunpack.c.l.b16 %v129
    %v411 = vunpack.c.h.b16 %v129
    %v412 = vunpack.c.l.b16 %v130
    %v413 = vunpack.c.h.b16 %v130
    %v414 = vunpack.c.l.b16 %v131
    %v415 = vunpack.c.h.b16 %v131
    %v416 = vunpack.c.l.b16 %v132
    %v417 = vunpack.c.h.b16 %v132
    %v418 = vunpack.c.l.b16 %v133
    %v419 = vunpack.c.h.b16 %v133
    %v420 = vunpack.c.l.b16 %v134
    %v421 = vunpack.c.h.b16 %v134
    %v422 = vunpack.c.l.b16 %v135
    %v423 = vunpack.c.h.b16 %v135
    %v424 = vunpack.c.l.b16 %v136
    %v425 = vunpack.c.h.b16 %v136
    %v426 = vunpack.c.l.b16 %v137
    %v427 = vunpack.c.h.b16 %v137
    %v428 = vunpack.c.l.b16 %v138
    %v429 = vunpack.c.h.b16 %v138
    %v430 = vunpack.c.l.b16 %v139
    %v431 = vunpack.c.h.b16 %v139
    %v432 = vunpack.c.l.b16 %v140
    %v433 = vunpack.c.h.b16 %v140
    %v434 = vunpack.c.l.b16 %v141
    %v435 = vunpack.c.h.b16 %v141
    %v436 = vunpack.c.l.b16 %v142
    %v437 = vunpack.c.h.b16 %v142
    %v438 = vunpack.c.l.b16 %v143
    %v439 = vunpack.c.h.b16 %v143
    %v440 = vunpack.c.l.b16 %v144
    %v441 = vunpack.c.h.b16 %v144
    %v442 = vunpack.c.l.b16 %v145
    %v443 = vunpack.c.h.b16 %v145
    %v444 = vunpack.c.l.b16 %v146
    %v445 = vunpack.c.h.b16 %v146
    %v446 = vunpack.c.l.b16 %v147
    %v447 = vunpack.c.h.b16 %v147
    %v448 = vunpack.c.l.b16 %v148
    %v449 = vunpack.c.h.b16 %v148
    %v450 = vunpack.c.l.b16 %v149
    %v451 = vunpack.c.h.b16 %v149
    %v452 = vunpack.c.l.b16 %v150
    %v453 = vunpack.c.h.b16 %v150
    %v454 = vunpack.c.l.b16 %v151
    %v455 = vunpack.c.h.b16 %v151
    %v456 = vunpack.c.l.b16 %v152
    %v457 = vunpack.c.h.b16 %v152
    %v458 = vunpack.c.l.b16 %v153
    %v459 = vunpack.c.h.b16 %v153
    %v460 = vunpack.c.l.b16 %v154
    %v461 = vunpack.c.h.b16 %v154
    %v462 = vunpack.c.l.b16 %v155
    %v463 = vunpack.c.h.b16 %v155
    %v464 = vunpack.c.l.b16 %v156
    %v465 = vunpack.c.h.b16 %v156
    %v466 = vunpack.c.l.b16 %v157
    %v467 = vunpack.c.h.b16 %v157
    %v468 = vunpack.c.l.b16 %v158
    %v469 = vunpack.c.h.b16 %v158
    %v470 = vunpack.c.l.b16 %v159
    %v471 = vunpack.c.h.b16 %v159
    %v472 = vunpack.c.l.b16 %v160
    %v473 = vunpack.c.h.b16 %v160
    %v474 = vunpack.c.l.b16 %v161
    %v475 = vunpack.c.h.b16 %v161
    %v476 = vunpack.c.l.b16 %v162
    %v477 = vunpack.c.h.b16 %v162
    %v478 = vunpack.c.l.b16 %v163
    %v479 = vunpack.c.h.b16 %v163
    %v480 = vunpack.c.l.b16 %v164
    %v481 = vunpack.c.h.b16 %v164
    %v482 = vunpack.c.l.b16 %v165
    %v483 = vunpack.c.h.b16 %v165
    %v484 = vunpack.c.l.b16 %v166
    %v485 = vunpack.c.h.b16 %v166
    %v486 = vunpack.c.l.b16 %v167
    %v487 = vunpack.c.h.b16 %v167
    %v488 = vunpack.c.l.b16 %v168
    %v489 = vunpack.c.h.b16 %v168
    %v490 = vunpack.c.l.b16 %v169
    %v491 = vunpack.c.h.b16 %v169
    %v492 = vunpack.c.l.b16 %v170
    %v493 = vunpack.c.h.b16 %v170
    %v494 = vunpack.c.l.b16 %v171
    %v495 = vunpack.c.h.b16 %v171
    %v496 = vunpack.c.l.b16 %v172
    %v497 = vunpack.c.h.b16 %v172
    %v498 = vunpack.c.l.b16 %v173
    %v499 = vunpack.c.h.b16 %v173
    %v500 = vunpack.c.l.b16 %v174
    %v501 = vunpack.c.h.b16 %v174
    %v502 = vunpack.c.l.b16 %v175
    %v503 = vunpack.c.h.b16 %v175
    %v504 = vunpack.c.l.b16 %v176
    %v505 = vunpack.c.h.b16 %v176
    %v506 = vunpack.c.l.b16 %v177
    %v507 = vunpack.c.h.b16 %v177
    %v508 = vunpack.c.l.b16 %v178
    %v509 = vunpack.c.h.b16 %v178
    %v510 = vunpack.c.l.b16 %v179
    %v511 = vunpack.c.h.b16 %v179
    %v512 = vunpack.c.l.b16 %v180
    %v513 = vunpack.c.h.b16 %v180
    %v514 = vunpack.c.l.b16 %v181
    %v515 = vunpack.c.h.b16 %v181
    %v516 = vunpack.c.l.b16 %v182
    %v517 = vunpack.c.h.b16 %v182
    %v518 = vunpack.c.l.b16 %v183
    %v519 = vunpack.c.h.b16 %v183
    %v520 = vunpack.c.l.b16 %v184
    %v521 = vunpack.c.h.b16 %v184
    %v522 = vunpack.c.l.b16 %v185
    %v523 = vunpack.c.h.b16 %v185
    %v524 = vunpack.c.l.b16 %v186
    %v525 = vunpack.c.h.b16 %v186
    %v526 = vunpack.c.l.b16 %v187
    %v527 = vunpack.c.h.b16 %v187
    %v528 = vunpack.c.l.b16 %v188
    %v529 = vunpack.c.h.b16 %v188
    %v530 = vunpack.c.l.b16 %v189
    %v531 = vunpack.c.h.b16 %v189
    %v532 = vunpack.c.l.b16 %v190
    %v533 = vunpack.c.h.b16 %v190
    %v534 = vunpack.c.l.b16 %v191
    %v535 = vunpack.c.h.b16 %v191
    %v536 = vunpack.c.l.b16 %v192
    %v537 = vunpack.c.h.b16 %v192
    %v538 = vunpack.c.l.b16 %v193
    %v539 = vunpack.c.h.b16 %v193
    %v540 = vunpack.c.l.b16 %v194
    %v541 = vunpack.c.h.b16 %v194
    %v542 = vunpack.c.l.b16 %v195
    %v543 = vunpack.c.h.b16 %v195
    %v544 = vunpack.c.l.b16 %v196
    %v545 = vunpack.c.h.b16 %v196
    %v546 = vunpack.c.l.b16 %v197
    %v547 = vunpack.c.h.b16 %v197
    %v548 = vunpack.c.l.b16 %v198
    %v549 = vunpack.c.h.b16 %v198
    %v550 = vunpack.c.l.b16 %v199
    %v551 = vunpack.c.h.b16 %v199
    %v552 = vunpack.c.l.b16 %v200
    %v553 = vunpack.c.h.b16 %v200
    %v554 = vunpack.c.l.b16 %v201
    %v555 = vunpack.c.h.b16 %v201
    %v556 = vunpack.c.l.b16 %v202
    %v557 = vunpack.c.h.b16 %v202
    %v558 = vunpack.c.l.b16 %v203
    %v559 = vunpack.c.h.b16 %v203
    %v560 = vunpack.c.l.b16 %v204
    %v561 = vunpack.c.h.b16 %v204
    %v562 = vunpack.c.l.b16 %v205
    %v563 = vunpack.c.h.b16 %v205
    %v564 = vunpack.c.l.b16 %v206
    %v565 = vunpack.c.h.b16 %v206
    %v566 = vunpack.c.l.b16 %v207
    %v567 = vunpack.c.h.b16 %v207
    %v568 = vunpack.c.l.b16 %v208
    %v569 = vunpack.c.h.b16 %v208
    %v570 = vunpack.c.l.b16 %v209
    %v571 = vunpack.c.h.b16 %v209
    %v572 = vunpack.c.l.b16 %v210
    %v573 = vunpack.c.h.b16 %v210
    %v574 = vunpack.c.l.b16 %v211
    %v575 = vunpack.c.h.b16 %v211
    %v576 = vunpack.c.l.b16 %v212
    %v577 = vunpack.c.h.b16 %v212
    %v578 = vunpack.c.l.b16 %v213
    %v579 = vunpack.c.h.b16 %v213
    %v580 = vunpack.c.l.b16 %v214
    %v581 = vunpack.c.h.b16 %v214
    %v582 = vunpack.c.l.b16 %v215
    %v583 = vunpack.c.h.b16 %v215
    %v584 = vunpack.c.l.b16 %v216
    %v585 = vunpack.c.h.b16 %v216
    %v586 = vunpack.c.l.b16 %v217
    %v587 = vunpack.c.h.b16 %v217
    %v588 = vunpack.c.l.b16 %v218
    %v589 = vunpack.c.h.b16 %v218
    %v590 = vunpack.c.l.b16 %v219
    %v591 = vunpack.c.h.b16 %v219
    %v592 = vunpack.c.l.b16 %v220
    %v593 = vunpack.c.h.b16 %v220
    %v594 = vunpack.c.l.b16 %v221
    %v595 = vunpack.c.h.b16 %v221
    %v596 = vunpack.c.l.b16 %v222
    %v597 = vunpack.c.h.b16 %v222
    %v598 = vunpack.c.l.b16 %v223
    %v599 = vunpack.c.h.b16 %v223
    %v600 = vunpack.c.l.b16 %v224
    %v601 = vunpack.c.h.b16 %v224
    %v602 = vunpack.c.l.b16 %v225
    %v603 = vunpack.c.h.b16 %v225
    %v604 = vunpack.c.l.b16 %v226
    %v605 = vunpack.c.h.b16 %v226
    %v606 = vunpack.c.l.b16 %v227
    %v607 = vunpack.c.h.b16 %v227
    %v608 = vunpack.c.l.b16 %v228
    %v609 = vunpack.c.h.b16 %v228
    %v610 = vunpack.c.l.b16 %v229
    %v611 = vunpack.c.h.b16 %v229
    %v612 = vunpack.c.l.b16 %v230
    %v613 = vunpack.c.h.b16 %v230
    %v614 = vunpack.c.l.b16 %v231
    %v615 = vunpack.c.h.b16 %v231
    %v616 = vunpack.c.l.b16 %v232
    %v617 = vunpack.c.h.b16 %v232
    %v618 = vunpack.c.l.b16 %v233
    %v619 = vunpack.c.h.b16 %v233
    %v620 = vunpack.c.l.b16 %v234
    %v621 = vunpack.c.h.b16 %v234
    %v622 = vunpack.c.l.b16 %v235
    %v623 = vunpack.c.h.b16 %v235
    %v624 = vunpack.c.l.b16 %v236
    %v625 = vunpack.c.h.b16 %v236
    %v626 = vunpack.c.l.b16 %v237
    %v627 = vunpack.c.h.b16 %v237
    %v628 = vunpack.c.l.b16 %v238
    %v629 = vunpack.c.h.b16 %v238
    %v630 = vunpack.c.l.b16 %v239
    %v631 = vunpack.c.h.b16 %v239
    %v632 = vunpack.c.l.b16 %v240
    %v633 = vunpack.c.h.b16 %v240
    %v634 = vunpack.c.l.b16 %v241
    %v635 = vunpack.c.h.b16 %v241
    %v636 = vunpack.c.l.b16 %v242
    %v637 = vunpack.c.h.b16 %v242
    %v638 = vunpack.c.l.b16 %v243
    %v639 = vunpack.c.h.b16 %v243
    %v640 = vunpack.c.l.b16 %v244
    %v641 = vunpack.c.h.b16 %v244
    %v642 = vunpack.c.l.b16 %v245
    %v643 = vunpack.c.h.b16 %v245
    %v644 = vunpack.c.l.b16 %v246
    %v645 = vunpack.c.h.b16 %v246
    %v646 = vunpack.c.l.b16 %v247
    %v647 = vunpack.c.h.b16 %v247
    %v648 = vunpack.c.l.b16 %v248
    %v649 = vunpack.c.h.b16 %v248
    %v650 = vunpack.c.l.b16 %v249
    %v651 = vunpack.c.h.b16 %v249
    %v652 = vunpack.c.l.b16 %v250
    %v653 = vunpack.c.h.b16 %v250
    %v654 = vunpack.c.l.b16 %v251
    %v655 = vunpack.c.h.b16 %v251
    %v656 = vunpack.c.l.b16 %v252
    %v657 = vunpack.c.h.b16 %v252
    %v658 = vunpack.c.l.b16 %v253
    %v659 = vunpack.c.h.b16 %v253
    %v660 = vpack.c.b16 %v408, %v404
    %v661 = vpack.c.b16 %v409, %v405
    %v662 = vpack.c.b16 %v410, %v406
    %v663 = vpack.c.b16 %v411, %v407
    %v664 = vpack.c.b16 %v416, %v412
    %v665 = vpack.c.b16 %v417, %v413
    %v666 = vpack.c.b16 %v418, %v414
    %v667 = vpack.c.b16 %v419, %v415
    %v668 = vpack.c.b16 %v424, %v420
    %v669 = vpack.c.b16 %v425, %v421
    %v670 = vpack.c.b16 %v426, %v422
    %v671 = vpack.c.b16 %v427, %v423
    %v672 = vpack.c.b16 %v432, %v428
    %v673 = vpack.c.b16 %v433, %v429
    %v674 = vpack.c.b16 %v434, %v430
    %v675 = vpack.c.b16 %v435, %v431
    %v676 = vpack.c.b16 %v440, %v436
    %v677 = vpack.c.b16 %v441, %v437
    %v678 = vpack.c.b16 %v442, %v438
    %v679 = vpack.c.b16 %v443, %v439
    %v680 = vpack.c.b16 %v448, %v444
    %v681 = vpack.c.b16 %v449, %v445
    %v682 = vpack.c.b16 %v450, %v446
    %v683 = vpack.c.b16 %v451, %v447
    %v684 = vpack.c.b16 %v456, %v452
    %v685 = vpack.c.b16 %v457, %v453
    %v686 = vpack.c.b16 %v458, %v454
    %v687 = vpack.c.b16 %v459, %v455
    %v688 = vpack.c.b16 %v464, %v460
    %v689 = vpack.c.b16 %v465, %v461
    %v690 = vpack.c.b16 %v466, %v462
    %v691 = vpack.c.b16 %v467, %v463
    %v692 = vpack.c.b16 %v472, %v468
    %v693 = vpack.c.b16 %v473, %v469
    %v694 = vpack.c.b16 %v474, %v470
    %v695 = vpack.c.b16 %v475, %v471
    %v696 = vpack.c.b16 %v480, %v476
    %v697 = vpack.c.b16 %v481, %v477
    %v698 = vpack.c.b16 %v482, %v478
    %v699 = vpack.c.b16 %v483, %v479
    %v700 = vpack.c.b16 %v488, %v484
    %v701 = vpack.c.b16 %v489, %v485
    %v702 = vpack.c.b16 %v490, %v486
    %v703 = vpack.c.b16 %v491, %v487
    %v704 = vpack.c.b16 %v496, %v492
    %v705 = vpack.c.b16 %v497, %v493
    %v706 = vpack.c.b16 %v498, %v494
    %v707 = vpack.c.b16 %v499, %v495
    %v708 = vpack.c.b16 %v504, %v500
    %v709 = vpack.c.b16 %v505, %v501
    %v710 = vpack.c.b16 %v506, %v502
    %v711 = vpack.c.b16 %v507, %v503
    %v712 = vpack.c.b16 %v512, %v508
    %v713 = vpack.c.b16 %v513, %v509
    %v714 = vpack.c.b16 %v514, %v510
    %v715 = vpack.c.b16 %v515, %v511
    %v716 = vpack.c.b16 %v520, %v516
    %v717 = vpack.c.b16 %v521, %v517
    %v718 = vpack.c.b16 %v522, %v518
    %v719 = vpack.c.b16 %v523, %v519
    %v720 = vpack.c.b16 %v528, %v524
    %v721 = vpack.c.b16 %v529, %v525
    %v722 = vpack.c.b16 %v530, %v526
    %v723 = vpack.c.b16 %v531, %v527
    %v724 = vpack.c.b16 %v536, %v532
    %v725 = vpack.c.b16 %v537, %v533
    %v726 = vpack.c.b16 %v538, %v534
    %v727 = vpack.c.b16 %v539, %v535
    %v728 = vpack.c.b16 %v544, %v540
    %v729 = vpack.c.b16 %v545, %v541
    %v730 = vpack.c.b16 %v546, %v542
    %v731 = vpack.c.b16 %v547, %v543
    %v732 = vpack.c.b16 %v552, %v548
    %v733 = vpack.c.b16 %v553, %v549
    %v734 = vpack.c.b16 %v554, %v550
    %v735 = vpack.c.b16 %v555, %v551
    %v736 = vpack.c.b16 %v560, %v556
    %v737 = vpack.c.b16 %v561, %v557
    %v738 = vpack.c.b16 %v562, %v558
    %v739 = vpack.c.b16 %v563, %v559
    %v740 = vpack.c.b16 %v568, %v564
    %v741 = vpack.c.b16 %v569, %v565
    %v742 = vpack.c.b16 %v570, %v566
    %v743 = vpack.c.b16 %v571, %v567
    %v744 = vpack.c.b16 %v576, %v572
    %v745 = vpack.c.b16 %v577, %v573
    %v746 = vpack.c.b16 %v578, %v574
    %v747 = vpack.c.b16 %v579, %v575
    %v748 = vpack.c.b16 %v584, %v580
    %v749 = vpack.c.b16 %v585, %v581
    %v750 = vpack.c.b16 %v586, %v582
    %v751 = vpack.c.b16 %v587, %v583
    %v752 = vpack.c.b16 %v592, %v588
    %v753 = vpack.c.b16 %v593, %v589
    %v754 = vpack.c.b16 %v594, %v590
    %v755 = vpack.c.b16 %v595, %v591
    %v756 = vpack.c.b16 %v600, %v596
    %v757 = vpack.c.b16 %v601, %v597
    %v758 = vpack.c.b16 %v602, %v598
    %v759 = vpack.c.b16 %v603, %v599
    %v760 = vpack.c.b16 %v608, %v604
    %v761 = vpack.c.b16 %v609, %v605
    %v762 = vpack.c.b16 %v610, %v606
    %v763 = vpack.c.b16 %v611, %v607
    %v764 = vpack.c.b16 %v616, %v612
    %v765 = vpack.c.b16 %v617, %v613
    %v766 = vpack.c.b16 %v618, %v614
    %v767 = vpack.c.b16 %v619, %v615
    %v768 = vpack.c.b16 %v624, %v620
    %v769 = vpack.c.b16 %v625, %v621
    %v770 = vpack.c.b16 %v626, %v622
    %v771 = vpack.c.b16 %v627, %v623
    %v772 = vpack.c.b16 %v632, %v628
    %v773 = vpack.c.b16 %v633, %v629
    %v774 = vpack.c.b16 %v634, %v630
    %v775 = vpack.c.b16 %v635, %v631
    %v776 = vpack.c.b16 %v640, %v636
    %v777 = vpack.c.b16 %v641, %v637
    %v778 = vpack.c.b16 %v642, %v638
    %v779 = vpack.c.b16 %v643, %v639
    %v780 = vpack.c.b16 %v648, %v644
    %v781 = vpack.c.b16 %v649, %v645
    %v782 = vpack.c.b16 %v650, %v646
    %v783 = vpack.c.b16 %v651, %v647
    %v784 = vpack.c.b16 %v656, %v652
    %v785 = vpack.c.b16 %v657, %v653
    %v786 = vpack.c.b16 %v658, %v654
    %v787 = vpack.c.b16 %v659, %v655
    %916 = vmatprep.subr.bf16.mxu0 %v661
    %917 = vmatpush1.bf16.msra.mxu0 %v660
    %918 = vmatprep.subr.bf16.mxu0 %v665
    %919 = vmatpush1.bf16.msra.mxu0 %v664
    %920 = vmatprep.subr.bf16.mxu0 %v669
    %921 = vmatpush1.bf16.msra.mxu0 %v668
    %922 = vmatprep.subr.bf16.mxu0 %v673
    %923 = vmatpush1.bf16.msra.mxu0 %v672
    %924 = vmatprep.subr.bf16.mxu0 %v677
    %925 = vmatpush1.bf16.msra.mxu0 %v676
    %926 = vmatprep.subr.bf16.mxu0 %v681
    %927 = vmatpush1.bf16.msra.mxu0 %v680
    %928 = vmatprep.subr.bf16.mxu0 %v685
    %929 = vmatpush1.bf16.msra.mxu0 %v684
    %930 = vmatprep.subr.bf16.mxu0 %v689
    %931 = vmatpush1.bf16.msra.mxu0 %v688
    %932 = vmatprep.subr.bf16.mxu0 %v693
    %933 = vmatpush1.bf16.msra.mxu0 %v692
    %934 = vmatprep.subr.bf16.mxu0 %v697
    %935 = vmatpush1.bf16.msra.mxu0 %v696
    %936 = vmatprep.subr.bf16.mxu0 %v701
    %937 = vmatpush1.bf16.msra.mxu0 %v700
    %938 = vmatprep.subr.bf16.mxu0 %v705
    %939 = vmatpush1.bf16.msra.mxu0 %v704
    %940 = vmatprep.subr.bf16.mxu0 %v709
    %941 = vmatpush1.bf16.msra.mxu0 %v708
    %942 = vmatprep.subr.bf16.mxu0 %v713
    %943 = vmatpush1.bf16.msra.mxu0 %v712
    %944 = vmatprep.subr.bf16.mxu0 %v717
    %945 = vmatpush1.bf16.msra.mxu0 %v716
    %946 = vmatprep.subr.bf16.mxu0 %v721
    %947 = vmatpush1.bf16.msra.mxu0 %v720
    %948 = vmatprep.mubr.bf16.mxu0 %v123
    %949 = vmatmul.mubr.bf16.gmra.mrb[0].mxu0 %v122
    %v950 = vpop.f32.mrb[0].mxu0
    %v951 = vadd.f32 %v259, %v950
    %v952 = vpop.f32.mrb[0].mxu0
    %v953 = vadd.f32 %v263, %v952
    %v954 = vpop.f32.mrb[0].mxu0
    %v955 = vpop.f32.mrb[0].mxu0
    %956 = vdwg.mxu0
    %957 = vmatprep.subr.bf16.mxu0 %v725
    %958 = vmatpush1.bf16.msra.mxu0 %v724
    %959 = vmatprep.subr.bf16.mxu0 %v729
    %960 = vmatpush1.bf16.msra.mxu0 %v728
    %961 = vmatprep.subr.bf16.mxu0 %v733
    %962 = vmatpush1.bf16.msra.mxu0 %v732
    %963 = vmatprep.subr.bf16.mxu0 %v737
    %964 = vmatpush1.bf16.msra.mxu0 %v736
    %965 = vmatprep.subr.bf16.mxu0 %v741
    %966 = vmatpush1.bf16.msra.mxu0 %v740
    %967 = vmatprep.subr.bf16.mxu0 %v745
    %968 = vmatpush1.bf16.msra.mxu0 %v744
    %969 = vmatprep.subr.bf16.mxu0 %v749
    %970 = vmatpush1.bf16.msra.mxu0 %v748
    %971 = vmatprep.subr.bf16.mxu0 %v753
    %972 = vmatpush1.bf16.msra.mxu0 %v752
    %973 = vmatprep.subr.bf16.mxu0 %v757
    %974 = vmatpush1.bf16.msra.mxu0 %v756
    %975 = vmatprep.subr.bf16.mxu0 %v761
    %976 = vmatpush1.bf16.msra.mxu0 %v760
    %977 = vmatprep.subr.bf16.mxu0 %v765
    %978 = vmatpush1.bf16.msra.mxu0 %v764
    %979 = vmatprep.subr.bf16.mxu0 %v769
    %980 = vmatpush1.bf16.msra.mxu0 %v768
    %981 = vmatprep.subr.bf16.mxu0 %v773
    %982 = vmatpush1.bf16.msra.mxu0 %v772
    %983 = vmatprep.subr.bf16.mxu0 %v777
    %984 = vmatpush1.bf16.msra.mxu0 %v776
    %985 = vmatprep.subr.bf16.mxu0 %v781
    %986 = vmatpush1.bf16.msra.mxu0 %v780
    %987 = vmatprep.subr.bf16.mxu0 %v785
    %988 = vmatpush1.bf16.msra.mxu0 %v784
    %989 = vmatprep.mubr.bf16.mxu0 %v125
    %990 = vmatmul.mubr.bf16.gmra.mrb[0].mxu0 %v124
    %v991 = vpop.f32.mrb[0].mxu0
    %v992 = vadd.f32 %v951, %v991
    %v993 = vpop.f32.mrb[0].mxu0
    %v994 = vadd.f32 %v953, %v993
    %v995 = vpop.f32.mrb[0].mxu0
    %v996 = vpop.f32.mrb[0].mxu0
    %997 = vdwg.mxu0
    %998 = vmatprep.subr.bf16.mxu0 %v663
    %999 = vmatpush1.bf16.msra.mxu0 %v662
    %1000 = vmatprep.subr.bf16.mxu0 %v667
    %1001 = vmatpush1.bf16.msra.mxu0 %v666
    %1002 = vmatprep.subr.bf16.mxu0 %v671
    %1003 = vmatpush1.bf16.msra.mxu0 %v670
    %1004 = vmatprep.subr.bf16.mxu0 %v675
    %1005 = vmatpush1.bf16.msra.mxu0 %v674
    %1006 = vmatprep.subr.bf16.mxu0 %v679
    %1007 = vmatpush1.bf16.msra.mxu0 %v678
    %1008 = vmatprep.subr.bf16.mxu0 %v683
    %1009 = vmatpush1.bf16.msra.mxu0 %v682
    %1010 = vmatprep.subr.bf16.mxu0 %v687
    %1011 = vmatpush1.bf16.msra.mxu0 %v686
    %1012 = vmatprep.subr.bf16.mxu0 %v691
    %1013 = vmatpush1.bf16.msra.mxu0 %v690
    %1014 = vmatprep.subr.bf16.mxu0 %v695
    %1015 = vmatpush1.bf16.msra.mxu0 %v694
    %1016 = vmatprep.subr.bf16.mxu0 %v699
    %1017 = vmatpush1.bf16.msra.mxu0 %v698
    %1018 = vmatprep.subr.bf16.mxu0 %v703
    %1019 = vmatpush1.bf16.msra.mxu0 %v702
    %1020 = vmatprep.subr.bf16.mxu0 %v707
    %1021 = vmatpush1.bf16.msra.mxu0 %v706
    %1022 = vmatprep.subr.bf16.mxu0 %v711
    %1023 = vmatpush1.bf16.msra.mxu0 %v710
    %1024 = vmatprep.subr.bf16.mxu0 %v715
    %1025 = vmatpush1.bf16.msra.mxu0 %v714
    %1026 = vmatprep.subr.bf16.mxu0 %v719
    %1027 = vmatpush1.bf16.msra.mxu0 %v718
    %1028 = vmatprep.subr.bf16.mxu0 %v723
    %1029 = vmatpush1.bf16.msra.mxu0 %v722
    %1030 = vmatprep.mubr.bf16.mxu0 %v123
    %1031 = vmatmul.mubr.bf16.gmra.mrb[0].mxu0 %v122
    %v1032 = vpop.f32.mrb[0].mxu0
    %v1033 = vadd.f32 %v267, %v1032
    %v1034 = vpop.f32.mrb[0].mxu0
    %v1035 = vadd.f32 %v271, %v1034
    %v1036 = vpop.f32.mrb[0].mxu0
    %v1037 = vpop.f32.mrb[0].mxu0
    %1038 = vdwg.mxu0
    %1039 = vmatprep.subr.bf16.mxu0 %v727
    %1040 = vmatpush1.bf16.msra.mxu0 %v726
    %1041 = vmatprep.subr.bf16.mxu0 %v731
    %1042 = vmatpush1.bf16.msra.mxu0 %v730
    %1043 = vmatprep.subr.bf16.mxu0 %v735
    %1044 = vmatpush1.bf16.msra.mxu0 %v734
    %1045 = vmatprep.subr.bf16.mxu0 %v739
    %1046 = vmatpush1.bf16.msra.mxu0 %v738
    %1047 = vmatprep.subr.bf16.mxu0 %v743
    %1048 = vmatpush1.bf16.msra.mxu0 %v742
    %1049 = vmatprep.subr.bf16.mxu0 %v747
    %1050 = vmatpush1.bf16.msra.mxu0 %v746
    %1051 = vmatprep.subr.bf16.mxu0 %v751
    %1052 = vmatpush1.bf16.msra.mxu0 %v750
    %1053 = vmatprep.subr.bf16.mxu0 %v755
    %1054 = vmatpush1.bf16.msra.mxu0 %v754
    %1055 = vmatprep.subr.bf16.mxu0 %v759
    %1056 = vmatpush1.bf16.msra.mxu0 %v758
    %1057 = vmatprep.subr.bf16.mxu0 %v763
    %1058 = vmatpush1.bf16.msra.mxu0 %v762
    %1059 = vmatprep.subr.bf16.mxu0 %v767
    %1060 = vmatpush1.bf16.msra.mxu0 %v766
    %1061 = vmatprep.subr.bf16.mxu0 %v771
    %1062 = vmatpush1.bf16.msra.mxu0 %v770
    %1063 = vmatprep.subr.bf16.mxu0 %v775
    %1064 = vmatpush1.bf16.msra.mxu0 %v774
    %1065 = vmatprep.subr.bf16.mxu0 %v779
    %1066 = vmatpush1.bf16.msra.mxu0 %v778
    %1067 = vmatprep.subr.bf16.mxu0 %v783
    %1068 = vmatpush1.bf16.msra.mxu0 %v782
    %1069 = vmatprep.subr.bf16.mxu0 %v787
    %1070 = vmatpush1.bf16.msra.mxu0 %v786
    %1071 = vmatprep.mubr.bf16.mxu0 %v125
    %1072 = vmatmul.mubr.bf16.gmra.mrb[0].mxu0 %v124
    %v1073 = vpop.f32.mrb[0].mxu0
    %v1074 = vadd.f32 %v1033, %v1073
    %v1075 = vpop.f32.mrb[0].mxu0
    %v1076 = vadd.f32 %v1035, %v1075
    %v1077 = vpop.f32.mrb[0].mxu0
    %v1078 = vpop.f32.mrb[0].mxu0
    %1079 = vdwg.mxu0
    %v1080 = vrot.slane %v992, 4
    %v1081 = vadd.f32 %v992, %v1080
    %v1082 = vrot.slane %v1081, 2
    %v1083 = vadd.f32 %v1081, %v1082
    %v1084 = vrot.slane %v1083, 1
    %v1085 = vadd.f32 %v1083, %v1084
    %v1086 = vrot.slane %v994, 4
    %v1087 = vadd.f32 %v994, %v1086
    %v1088 = vrot.slane %v1087, 2
    %v1089 = vadd.f32 %v1087, %v1088
    %v1090 = vrot.slane %v1089, 1
    %v1091 = vadd.f32 %v1089, %v1090
    %v1092 = vrot.slane %v1074, 4
    %v1093 = vadd.f32 %v1074, %v1092
    %v1094 = vrot.slane %v1093, 2
    %v1095 = vadd.f32 %v1093, %v1094
    %v1096 = vrot.slane %v1095, 1
    %v1097 = vadd.f32 %v1095, %v1096
    %v1098 = vrot.slane %v1076, 4
    %v1099 = vadd.f32 %v1076, %v1098
    %v1100 = vrot.slane %v1099, 2
    %v1101 = vadd.f32 %v1099, %v1100
    %v1102 = vrot.slane %v1101, 1
    %v1103 = vadd.f32 %v1101, %v1102
    %v1104 = vmul.f32 %v992, %v992
    %v1105 = vmul.f32 %v994, %v994
    %v1106 = vmul.f32 %v1074, %v1074
    %v1107 = vmul.f32 %v1076, %v1076
    %v1108 = vrot.slane %v1104, 4
    %v1109 = vadd.f32 %v1104, %v1108
    %v1110 = vrot.slane %v1109, 2
    %v1111 = vadd.f32 %v1109, %v1110
    %v1112 = vrot.slane %v1111, 1
    %v1113 = vadd.f32 %v1111, %v1112
    %v1114 = vrot.slane %v1105, 4
    %v1115 = vadd.f32 %v1105, %v1114
    %v1116 = vrot.slane %v1115, 2
    %v1117 = vadd.f32 %v1115, %v1116
    %v1118 = vrot.slane %v1117, 1
    %v1119 = vadd.f32 %v1117, %v1118
    %v1120 = vrot.slane %v1106, 4
    %v1121 = vadd.f32 %v1106, %v1120
    %v1122 = vrot.slane %v1121, 2
    %v1123 = vadd.f32 %v1121, %v1122
    %v1124 = vrot.slane %v1123, 1
    %v1125 = vadd.f32 %v1123, %v1124
    %v1126 = vrot.slane %v1107, 4
    %v1127 = vadd.f32 %v1107, %v1126
    %v1128 = vrot.slane %v1127, 2
    %v1129 = vadd.f32 %v1127, %v1128
    %v1130 = vrot.slane %v1129, 1
    %v1131 = vadd.f32 %v1129, %v1130
    %vm1132 = vcmask 1040384
    %v1133 = vsel %vm1132, %v1085, %v1113
    %v1134 = vsel %vm1132, %v1091, %v1119
    %v1135 = vsel %vm1132, %v1097, %v1125
    %v1136 = vsel %vm1132, %v1103, %v1131
    %vm1137 = vcmask 1041408
    %v1138 = vsel %vm1137, %v1133, 0.0
    %v1139 = vsel %vm1137, %v1134, 0.0
    %v1140 = vsel %vm1137, %v1135, 0.0
    %v1141 = vsel %vm1137, %v1136, 0.0
    %1142 = vst [vmem:[%s6] sm:$0xff] %v1138
    %1143 = vst [vmem:[%s6 + $0x8] sm:$0xff] %v1139
    %1144 = vst [vmem:[%s6 + $0x10] sm:$0xff] %v1140
    %1145 = vst [vmem:[%s6 + $0x18] sm:$0xff] %v1141
    %v1146 = vpack.c.bf16 %v992, %v992
    %v1147 = vpack.c.bf16 %v994, %v994
    %v1148 = vpack.c.bf16 %v1074, %v1074
    %v1149 = vpack.c.bf16 %v1076, %v1076
    %v1154 = vunpack.c.l.b16 %v1146
    %v1155 = vunpack.c.l.b16 %v1147
    %v1156 = vunpack.c.l.b16 %v1148
    %v1157 = vunpack.c.l.b16 %v1149
    %v1158 = vpack.c.b16 %v1155, %v1154
    %v1159 = vpack.c.b16 %v1157, %v1156
    %1162 = vst [vmem:[%s5] sm:$0xff] %v1158
    %1163 = vst [vmem:[%s5 + $0x8] sm:$0xff] %v1159
    // Predicated region
    $region30: #{deepae_forward.4} parent=1 // pred_check
      _
    $region31: #{deepae_forward.4} parent=1 // pred_check_branch
      %1165 = sbr.rel (0) target = $region33
    $region32: #{deepae_forward.4} parent=1 // pred_region
      _
    $region33: #{deepae_forward.4} parent=1 // pred_fallthru
      _
    // Predicated region
    $region34: #{deepae_forward.4} parent=1 // pred_check
      _
    $region35: #{deepae_forward.4} parent=1 // pred_check_branch
      %1167 = sbr.rel (0) target = $region37
    $region36: #{deepae_forward.4} parent=1 // pred_region
      _
    $region37: #{deepae_forward.4} parent=1 // pred_fallthru
      _
    // Predicated region
    $region38: #{deepae_forward.4} parent=1 // pred_check
      _
    $region39: #{deepae_forward.4} parent=1 // pred_check_branch
      %1169 = sbr.rel (0) target = $region41
    $region40: #{deepae_forward.4} parent=1 // pred_region
      _
    $region41: #{deepae_forward.4} parent=1 // pred_fallthru
      _
    // Predicated region
    $region42: #{deepae_forward.4} parent=1 // pred_check
      _
    $region43: #{deepae_forward.4} parent=1 // pred_check_branch
      %1171 = sbr.rel (0) target = $region45
    $region44: #{deepae_forward.4} parent=1 // pred_region
      _
    $region45: #{deepae_forward.4} parent=1 // pred_fallthru
      _
    %1172 = vsyncpa [#allocation3], 1
    %1173 = vsyncpa [#allocation5], 1

// kernel: deepae_forward.5
$region0: #{deepae_forward.5}
  #allocation0 [shape = 'u32[]', space=smem, size = 0x4, offset = 0x4, fixed_abs, tag = 'smem constant byte address 0x4 - core index']
  #allocation1 [shape = 'u32[144,128]{1,0:T(1,128)}', space=vmem, size = 0x12000, scoped, tag = 'internal scratch']
  %s0 = inlined_call_operand.vmem [shape: bf16[8,512], index: 0, kind: input, shape index: {}]
  %s1 = inlined_call_operand.vmem [shape: f32[1,512], index: 1, kind: input, shape index: {}]
  %s2 = inlined_call_operand.vmem [shape: f32[1,512], index: 2, kind: input, shape index: {}]
  %s3 = inlined_call_operand.vmem [shape: bf16[512,512], index: 3, kind: input, shape index: {}]
  %s4 = inlined_call_operand.vmem [shape: f32[1,512], index: 4, kind: input, shape index: {}]
  %s5 = inlined_call_operand.vmem [shape: bf16[512,128], index: 5, kind: input, shape index: {}]
  %s6 = inlined_call_operand.vmem [shape: f32[1,128], index: 6, kind: input, shape index: {}]
  %s7 = inlined_call_operand.hbm [shape: f32[8,128], index: 7, kind: output, shape index: {}]
  %s8 = sld [smem:[#allocation0]]
  $region38: #{deepae_forward.5} parent=0
    _
  %s10 = ssub.s32 1, %s8
  %s11 = scalar_select 0, %s10, %s8
  $region1: #{deepae_forward.5} parent=0
    #allocation2 [shape = 'u8[4096]{0}', space=vmem, size = 0x1000, scoped, tag = 'output window, operand 0, single buffered']
    #allocation3 [shape = 's32[1]{0}', space=sflag, size = 0x4, scoped, tag = 'scoped memory for deepae_forward.5']
    %12 = vsyncpa [#allocation3], 0
    // Predicated region
    $region2: #{deepae_forward.5} parent=1 // pred_check
      _
    $region3: #{deepae_forward.5} parent=1 // pred_check_branch
      %14 = sbr.rel (0) target = $region5
    $region4: #{deepae_forward.5} parent=1 // pred_region
      _
    $region5: #{deepae_forward.5} parent=1 // pred_fallthru
      _
    // Predicated region
    $region6: #{deepae_forward.5} parent=1 // pred_check
      _
    $region7: #{deepae_forward.5} parent=1 // pred_check_branch
      %16 = sbr.rel (0) target = $region9
    $region8: #{deepae_forward.5} parent=1 // pred_region
      _
    $region9: #{deepae_forward.5} parent=1 // pred_fallthru
      _
    // Predicated region
    $region10: #{deepae_forward.5} parent=1 // pred_check
      _
    $region11: #{deepae_forward.5} parent=1 // pred_check_branch
      %18 = sbr.rel (0) target = $region13
    $region12: #{deepae_forward.5} parent=1 // pred_region
      _
    $region13: #{deepae_forward.5} parent=1 // pred_fallthru
      _
    // Predicated region
    $region14: #{deepae_forward.5} parent=1 // pred_check
      _
    $region15: #{deepae_forward.5} parent=1 // pred_check_branch
      %20 = sbr.rel (0) target = $region17
    $region16: #{deepae_forward.5} parent=1 // pred_region
      _
    $region17: #{deepae_forward.5} parent=1 // pred_fallthru
      _
    // Predicated region
    $region18: #{deepae_forward.5} parent=1 // pred_check
      _
    $region19: #{deepae_forward.5} parent=1 // pred_check_branch
      %22 = sbr.rel (0) target = $region21
    $region20: #{deepae_forward.5} parent=1 // pred_region
      _
    $region21: #{deepae_forward.5} parent=1 // pred_fallthru
      _
    // Predicated region
    $region22: #{deepae_forward.5} parent=1 // pred_check
      _
    $region23: #{deepae_forward.5} parent=1 // pred_check_branch
      %24 = sbr.rel (0) target = $region25
    $region24: #{deepae_forward.5} parent=1 // pred_region
      _
    $region25: #{deepae_forward.5} parent=1 // pred_fallthru
      _
    // Predicated region
    $region26: #{deepae_forward.5} parent=1 // pred_check
      _
    $region27: #{deepae_forward.5} parent=1 // pred_check_branch
      %26 = sbr.rel (0) target = $region29
    $region28: #{deepae_forward.5} parent=1 // pred_region
      _
    $region29: #{deepae_forward.5} parent=1 // pred_fallthru
      _
    %v28 = vld [vmem:[%s0] sm:$0xff]
    %v29 = vld [vmem:[%s0 + $0x8] sm:$0xff]
    %v30 = vunpack.c.l.bf16 %v28
    %v31 = vunpack.c.h.bf16 %v28
    %v32 = vunpack.c.l.bf16 %v29
    %v33 = vunpack.c.h.bf16 %v29
    %v34 = vld [vmem:[%s1] sm:$0xf]
    %v36 = vlaneseq
    %v37 = vshrl.u32 %v36, 7
    %v38 = vsub.s32 0, %v37
    %v39 = vrot.slane %v34, %v38
    %v40 = vlaneseq
    %v41 = vshrl.u32 %v40, 7
    %v42 = vsub.s32 1, %v41
    %v43 = vrot.slane %v34, %v42
    %v44 = vlaneseq
    %v45 = vshrl.u32 %v44, 7
    %v46 = vsub.s32 2, %v45
    %v47 = vrot.slane %v34, %v46
    %v48 = vlaneseq
    %v49 = vshrl.u32 %v48, 7
    %v50 = vsub.s32 3, %v49
    %v51 = vrot.slane %v34, %v50
    %v56 = vmul.f32 %v30, %v39
    %v57 = vmul.f32 %v31, %v43
    %v58 = vmul.f32 %v32, %v47
    %v59 = vmul.f32 %v33, %v51
    %v60 = vld [vmem:[%s2] sm:$0xf]
    %v62 = vlaneseq
    %v63 = vshrl.u32 %v62, 7
    %v64 = vsub.s32 0, %v63
    %v65 = vrot.slane %v60, %v64
    %v66 = vlaneseq
    %v67 = vshrl.u32 %v66, 7
    %v68 = vsub.s32 1, %v67
    %v69 = vrot.slane %v60, %v68
    %v70 = vlaneseq
    %v71 = vshrl.u32 %v70, 7
    %v72 = vsub.s32 2, %v71
    %v73 = vrot.slane %v60, %v72
    %v74 = vlaneseq
    %v75 = vshrl.u32 %v74, 7
    %v76 = vsub.s32 3, %v75
    %v77 = vrot.slane %v60, %v76
    %v82 = vadd.f32 %v56, %v65
    %v83 = vadd.f32 %v57, %v69
    %v84 = vadd.f32 %v58, %v73
    %v85 = vadd.f32 %v59, %v77
    %v86 = vmul.f32 %v82, 0.5
    %v87 = vmul.f32 %v83, 0.5
    %v88 = vmul.f32 %v84, 0.5
    %v89 = vmul.f32 %v85, 0.5
    %v90 = vtanh.pop %v86
    %v91 = vtanh.pop %v87
    %v92 = vtanh.pop %v88
    %v93 = vtanh.pop %v89
    %v94 = vadd.f32 %v90, 1.0
    %v95 = vadd.f32 %v91, 1.0
    %v96 = vadd.f32 %v92, 1.0
    %v97 = vadd.f32 %v93, 1.0
    %v98 = vmul.f32 %v94, 0.5
    %v99 = vmul.f32 %v95, 0.5
    %v100 = vmul.f32 %v96, 0.5
    %v101 = vmul.f32 %v97, 0.5
    %v102 = vpack.c.bf16 %v98, %v98
    %v103 = vpack.c.bf16 %v99, %v99
    %v104 = vpack.c.bf16 %v100, %v100
    %v105 = vpack.c.bf16 %v101, %v101
    %v106 = vld [vmem:[%s3] sm:$0xff]
    %v107 = vld [vmem:[%s3 + $0x8] sm:$0xff]
    %v108 = vld [vmem:[%s3 + $0x10] sm:$0xff]
    %v109 = vld [vmem:[%s3 + $0x18] sm:$0xff]
    %v110 = vld [vmem:[%s3 + $0x20] sm:$0xff]
    %v111 = vld [vmem:[%s3 + $0x28] sm:$0xff]
    %v112 = vld [vmem:[%s3 + $0x30] sm:$0xff]
    %v113 = vld [vmem:[%s3 + $0x38] sm:$0xff]
    %v114 = vld [vmem:[%s3 + $0x40] sm:$0xff]
    %v115 = vld [vmem:[%s3 + $0x48] sm:$0xff]
    %v116 = vld [vmem:[%s3 + $0x50] sm:$0xff]
    %v117 = vld [vmem:[%s3 + $0x58] sm:$0xff]
    %v118 = vld [vmem:[%s3 + $0x60] sm:$0xff]
    %v119 = vld [vmem:[%s3 + $0x68] sm:$0xff]
    %v120 = vld [vmem:[%s3 + $0x70] sm:$0xff]
    %v121 = vld [vmem:[%s3 + $0x78] sm:$0xff]
    %v122 = vld [vmem:[%s3 + $0x80] sm:$0xff]
    %v123 = vld [vmem:[%s3 + $0x88] sm:$0xff]
    %v124 = vld [vmem:[%s3 + $0x90] sm:$0xff]
    %v125 = vld [vmem:[%s3 + $0x98] sm:$0xff]
    %v126 = vld [vmem:[%s3 + $0xa0] sm:$0xff]
    %v127 = vld [vmem:[%s3 + $0xa8] sm:$0xff]
    %v128 = vld [vmem:[%s3 + $0xb0] sm:$0xff]
    %v129 = vld [vmem:[%s3 + $0xb8] sm:$0xff]
    %v130 = vld [vmem:[%s3 + $0xc0] sm:$0xff]
    %v131 = vld [vmem:[%s3 + $0xc8] sm:$0xff]
    %v132 = vld [vmem:[%s3 + $0xd0] sm:$0xff]
    %v133 = vld [vmem:[%s3 + $0xd8] sm:$0xff]
    %v134 = vld [vmem:[%s3 + $0xe0] sm:$0xff]
    %v135 = vld [vmem:[%s3 + $0xe8] sm:$0xff]
    %v136 = vld [vmem:[%s3 + $0xf0] sm:$0xff]
    %v137 = vld [vmem:[%s3 + $0xf8] sm:$0xff]
    %v138 = vld [vmem:[%s3 + $0x100] sm:$0xff]
    %v139 = vld [vmem:[%s3 + $0x108] sm:$0xff]
    %v140 = vld [vmem:[%s3 + $0x110] sm:$0xff]
    %v141 = vld [vmem:[%s3 + $0x118] sm:$0xff]
    %v142 = vld [vmem:[%s3 + $0x120] sm:$0xff]
    %v143 = vld [vmem:[%s3 + $0x128] sm:$0xff]
    %v144 = vld [vmem:[%s3 + $0x130] sm:$0xff]
    %v145 = vld [vmem:[%s3 + $0x138] sm:$0xff]
    %v146 = vld [vmem:[%s3 + $0x140] sm:$0xff]
    %v147 = vld [vmem:[%s3 + $0x148] sm:$0xff]
    %v148 = vld [vmem:[%s3 + $0x150] sm:$0xff]
    %v149 = vld [vmem:[%s3 + $0x158] sm:$0xff]
    %v150 = vld [vmem:[%s3 + $0x160] sm:$0xff]
    %v151 = vld [vmem:[%s3 + $0x168] sm:$0xff]
    %v152 = vld [vmem:[%s3 + $0x170] sm:$0xff]
    %v153 = vld [vmem:[%s3 + $0x178] sm:$0xff]
    %v154 = vld [vmem:[%s3 + $0x180] sm:$0xff]
    %v155 = vld [vmem:[%s3 + $0x188] sm:$0xff]
    %v156 = vld [vmem:[%s3 + $0x190] sm:$0xff]
    %v157 = vld [vmem:[%s3 + $0x198] sm:$0xff]
    %v158 = vld [vmem:[%s3 + $0x1a0] sm:$0xff]
    %v159 = vld [vmem:[%s3 + $0x1a8] sm:$0xff]
    %v160 = vld [vmem:[%s3 + $0x1b0] sm:$0xff]
    %v161 = vld [vmem:[%s3 + $0x1b8] sm:$0xff]
    %v162 = vld [vmem:[%s3 + $0x1c0] sm:$0xff]
    %v163 = vld [vmem:[%s3 + $0x1c8] sm:$0xff]
    %v164 = vld [vmem:[%s3 + $0x1d0] sm:$0xff]
    %v165 = vld [vmem:[%s3 + $0x1d8] sm:$0xff]
    %v166 = vld [vmem:[%s3 + $0x1e0] sm:$0xff]
    %v167 = vld [vmem:[%s3 + $0x1e8] sm:$0xff]
    %v168 = vld [vmem:[%s3 + $0x1f0] sm:$0xff]
    %v169 = vld [vmem:[%s3 + $0x1f8] sm:$0xff]
    %v170 = vld [vmem:[%s3 + $0x200] sm:$0xff]
    %v171 = vld [vmem:[%s3 + $0x208] sm:$0xff]
    %v172 = vld [vmem:[%s3 + $0x210] sm:$0xff]
    %v173 = vld [vmem:[%s3 + $0x218] sm:$0xff]
    %v174 = vld [vmem:[%s3 + $0x220] sm:$0xff]
    %v175 = vld [vmem:[%s3 + $0x228] sm:$0xff]
    %v176 = vld [vmem:[%s3 + $0x230] sm:$0xff]
    %v177 = vld [vmem:[%s3 + $0x238] sm:$0xff]
    %v178 = vld [vmem:[%s3 + $0x240] sm:$0xff]
    %v179 = vld [vmem:[%s3 + $0x248] sm:$0xff]
    %v180 = vld [vmem:[%s3 + $0x250] sm:$0xff]
    %v181 = vld [vmem:[%s3 + $0x258] sm:$0xff]
    %v182 = vld [vmem:[%s3 + $0x260] sm:$0xff]
    %v183 = vld [vmem:[%s3 + $0x268] sm:$0xff]
    %v184 = vld [vmem:[%s3 + $0x270] sm:$0xff]
    %v185 = vld [vmem:[%s3 + $0x278] sm:$0xff]
    %v186 = vld [vmem:[%s3 + $0x280] sm:$0xff]
    %v187 = vld [vmem:[%s3 + $0x288] sm:$0xff]
    %v188 = vld [vmem:[%s3 + $0x290] sm:$0xff]
    %v189 = vld [vmem:[%s3 + $0x298] sm:$0xff]
    %v190 = vld [vmem:[%s3 + $0x2a0] sm:$0xff]
    %v191 = vld [vmem:[%s3 + $0x2a8] sm:$0xff]
    %v192 = vld [vmem:[%s3 + $0x2b0] sm:$0xff]
    %v193 = vld [vmem:[%s3 + $0x2b8] sm:$0xff]
    %v194 = vld [vmem:[%s3 + $0x2c0] sm:$0xff]
    %v195 = vld [vmem:[%s3 + $0x2c8] sm:$0xff]
    %v196 = vld [vmem:[%s3 + $0x2d0] sm:$0xff]
    %v197 = vld [vmem:[%s3 + $0x2d8] sm:$0xff]
    %v198 = vld [vmem:[%s3 + $0x2e0] sm:$0xff]
    %v199 = vld [vmem:[%s3 + $0x2e8] sm:$0xff]
    %v200 = vld [vmem:[%s3 + $0x2f0] sm:$0xff]
    %v201 = vld [vmem:[%s3 + $0x2f8] sm:$0xff]
    %v202 = vld [vmem:[%s3 + $0x300] sm:$0xff]
    %v203 = vld [vmem:[%s3 + $0x308] sm:$0xff]
    %v204 = vld [vmem:[%s3 + $0x310] sm:$0xff]
    %v205 = vld [vmem:[%s3 + $0x318] sm:$0xff]
    %v206 = vld [vmem:[%s3 + $0x320] sm:$0xff]
    %v207 = vld [vmem:[%s3 + $0x328] sm:$0xff]
    %v208 = vld [vmem:[%s3 + $0x330] sm:$0xff]
    %v209 = vld [vmem:[%s3 + $0x338] sm:$0xff]
    %v210 = vld [vmem:[%s3 + $0x340] sm:$0xff]
    %v211 = vld [vmem:[%s3 + $0x348] sm:$0xff]
    %v212 = vld [vmem:[%s3 + $0x350] sm:$0xff]
    %v213 = vld [vmem:[%s3 + $0x358] sm:$0xff]
    %v214 = vld [vmem:[%s3 + $0x360] sm:$0xff]
    %v215 = vld [vmem:[%s3 + $0x368] sm:$0xff]
    %v216 = vld [vmem:[%s3 + $0x370] sm:$0xff]
    %v217 = vld [vmem:[%s3 + $0x378] sm:$0xff]
    %v218 = vld [vmem:[%s3 + $0x380] sm:$0xff]
    %v219 = vld [vmem:[%s3 + $0x388] sm:$0xff]
    %v220 = vld [vmem:[%s3 + $0x390] sm:$0xff]
    %v221 = vld [vmem:[%s3 + $0x398] sm:$0xff]
    %v222 = vld [vmem:[%s3 + $0x3a0] sm:$0xff]
    %v223 = vld [vmem:[%s3 + $0x3a8] sm:$0xff]
    %v224 = vld [vmem:[%s3 + $0x3b0] sm:$0xff]
    %v225 = vld [vmem:[%s3 + $0x3b8] sm:$0xff]
    %v226 = vld [vmem:[%s3 + $0x3c0] sm:$0xff]
    %v227 = vld [vmem:[%s3 + $0x3c8] sm:$0xff]
    %v228 = vld [vmem:[%s3 + $0x3d0] sm:$0xff]
    %v229 = vld [vmem:[%s3 + $0x3d8] sm:$0xff]
    %v230 = vld [vmem:[%s3 + $0x3e0] sm:$0xff]
    %v231 = vld [vmem:[%s3 + $0x3e8] sm:$0xff]
    %v232 = vld [vmem:[%s3 + $0x3f0] sm:$0xff]
    %v233 = vld [vmem:[%s3 + $0x3f8] sm:$0xff]
    %v234 = vld [vmem:[%s4] sm:$0xf]
    %v236 = vlaneseq
    %v237 = vshrl.u32 %v236, 7
    %v238 = vsub.s32 0, %v237
    %v239 = vrot.slane %v234, %v238
    %v240 = vlaneseq
    %v241 = vshrl.u32 %v240, 7
    %v242 = vsub.s32 1, %v241
    %v243 = vrot.slane %v234, %v242
    %v244 = vlaneseq
    %v245 = vshrl.u32 %v244, 7
    %v246 = vsub.s32 2, %v245
    %v247 = vrot.slane %v234, %v246
    %v248 = vlaneseq
    %v249 = vshrl.u32 %v248, 7
    %v250 = vsub.s32 3, %v249
    %v251 = vrot.slane %v234, %v250
    %v384 = vunpack.c.l.b16 %v106
    %v385 = vunpack.c.h.b16 %v106
    %v386 = vunpack.c.l.b16 %v107
    %v387 = vunpack.c.h.b16 %v107
    %v388 = vunpack.c.l.b16 %v108
    %v389 = vunpack.c.h.b16 %v108
    %v390 = vunpack.c.l.b16 %v109
    %v391 = vunpack.c.h.b16 %v109
    %v392 = vunpack.c.l.b16 %v110
    %v393 = vunpack.c.h.b16 %v110
    %v394 = vunpack.c.l.b16 %v111
    %v395 = vunpack.c.h.b16 %v111
    %v396 = vunpack.c.l.b16 %v112
    %v397 = vunpack.c.h.b16 %v112
    %v398 = vunpack.c.l.b16 %v113
    %v399 = vunpack.c.h.b16 %v113
    %v400 = vunpack.c.l.b16 %v114
    %v401 = vunpack.c.h.b16 %v114
    %v402 = vunpack.c.l.b16 %v115
    %v403 = vunpack.c.h.b16 %v115
    %v404 = vunpack.c.l.b16 %v116
    %v405 = vunpack.c.h.b16 %v116
    %v406 = vunpack.c.l.b16 %v117
    %v407 = vunpack.c.h.b16 %v117
    %v408 = vunpack.c.l.b16 %v118
    %v409 = vunpack.c.h.b16 %v118
    %v410 = vunpack.c.l.b16 %v119
    %v411 = vunpack.c.h.b16 %v119
    %v412 = vunpack.c.l.b16 %v120
    %v413 = vunpack.c.h.b16 %v120
    %v414 = vunpack.c.l.b16 %v121
    %v415 = vunpack.c.h.b16 %v121
    %v416 = vunpack.c.l.b16 %v122
    %v417 = vunpack.c.h.b16 %v122
    %v418 = vunpack.c.l.b16 %v123
    %v419 = vunpack.c.h.b16 %v123
    %v420 = vunpack.c.l.b16 %v124
    %v421 = vunpack.c.h.b16 %v124
    %v422 = vunpack.c.l.b16 %v125
    %v423 = vunpack.c.h.b16 %v125
    %v424 = vunpack.c.l.b16 %v126
    %v425 = vunpack.c.h.b16 %v126
    %v426 = vunpack.c.l.b16 %v127
    %v427 = vunpack.c.h.b16 %v127
    %v428 = vunpack.c.l.b16 %v128
    %v429 = vunpack.c.h.b16 %v128
    %v430 = vunpack.c.l.b16 %v129
    %v431 = vunpack.c.h.b16 %v129
    %v432 = vunpack.c.l.b16 %v130
    %v433 = vunpack.c.h.b16 %v130
    %v434 = vunpack.c.l.b16 %v131
    %v435 = vunpack.c.h.b16 %v131
    %v436 = vunpack.c.l.b16 %v132
    %v437 = vunpack.c.h.b16 %v132
    %v438 = vunpack.c.l.b16 %v133
    %v439 = vunpack.c.h.b16 %v133
    %v440 = vunpack.c.l.b16 %v134
    %v441 = vunpack.c.h.b16 %v134
    %v442 = vunpack.c.l.b16 %v135
    %v443 = vunpack.c.h.b16 %v135
    %v444 = vunpack.c.l.b16 %v136
    %v445 = vunpack.c.h.b16 %v136
    %v446 = vunpack.c.l.b16 %v137
    %v447 = vunpack.c.h.b16 %v137
    %v448 = vunpack.c.l.b16 %v138
    %v449 = vunpack.c.h.b16 %v138
    %v450 = vunpack.c.l.b16 %v139
    %v451 = vunpack.c.h.b16 %v139
    %v452 = vunpack.c.l.b16 %v140
    %v453 = vunpack.c.h.b16 %v140
    %v454 = vunpack.c.l.b16 %v141
    %v455 = vunpack.c.h.b16 %v141
    %v456 = vunpack.c.l.b16 %v142
    %v457 = vunpack.c.h.b16 %v142
    %v458 = vunpack.c.l.b16 %v143
    %v459 = vunpack.c.h.b16 %v143
    %v460 = vunpack.c.l.b16 %v144
    %v461 = vunpack.c.h.b16 %v144
    %v462 = vunpack.c.l.b16 %v145
    %v463 = vunpack.c.h.b16 %v145
    %v464 = vunpack.c.l.b16 %v146
    %v465 = vunpack.c.h.b16 %v146
    %v466 = vunpack.c.l.b16 %v147
    %v467 = vunpack.c.h.b16 %v147
    %v468 = vunpack.c.l.b16 %v148
    %v469 = vunpack.c.h.b16 %v148
    %v470 = vunpack.c.l.b16 %v149
    %v471 = vunpack.c.h.b16 %v149
    %v472 = vunpack.c.l.b16 %v150
    %v473 = vunpack.c.h.b16 %v150
    %v474 = vunpack.c.l.b16 %v151
    %v475 = vunpack.c.h.b16 %v151
    %v476 = vunpack.c.l.b16 %v152
    %v477 = vunpack.c.h.b16 %v152
    %v478 = vunpack.c.l.b16 %v153
    %v479 = vunpack.c.h.b16 %v153
    %v480 = vunpack.c.l.b16 %v154
    %v481 = vunpack.c.h.b16 %v154
    %v482 = vunpack.c.l.b16 %v155
    %v483 = vunpack.c.h.b16 %v155
    %v484 = vunpack.c.l.b16 %v156
    %v485 = vunpack.c.h.b16 %v156
    %v486 = vunpack.c.l.b16 %v157
    %v487 = vunpack.c.h.b16 %v157
    %v488 = vunpack.c.l.b16 %v158
    %v489 = vunpack.c.h.b16 %v158
    %v490 = vunpack.c.l.b16 %v159
    %v491 = vunpack.c.h.b16 %v159
    %v492 = vunpack.c.l.b16 %v160
    %v493 = vunpack.c.h.b16 %v160
    %v494 = vunpack.c.l.b16 %v161
    %v495 = vunpack.c.h.b16 %v161
    %v496 = vunpack.c.l.b16 %v162
    %v497 = vunpack.c.h.b16 %v162
    %v498 = vunpack.c.l.b16 %v163
    %v499 = vunpack.c.h.b16 %v163
    %v500 = vunpack.c.l.b16 %v164
    %v501 = vunpack.c.h.b16 %v164
    %v502 = vunpack.c.l.b16 %v165
    %v503 = vunpack.c.h.b16 %v165
    %v504 = vunpack.c.l.b16 %v166
    %v505 = vunpack.c.h.b16 %v166
    %v506 = vunpack.c.l.b16 %v167
    %v507 = vunpack.c.h.b16 %v167
    %v508 = vunpack.c.l.b16 %v168
    %v509 = vunpack.c.h.b16 %v168
    %v510 = vunpack.c.l.b16 %v169
    %v511 = vunpack.c.h.b16 %v169
    %v512 = vunpack.c.l.b16 %v170
    %v513 = vunpack.c.h.b16 %v170
    %v514 = vunpack.c.l.b16 %v171
    %v515 = vunpack.c.h.b16 %v171
    %v516 = vunpack.c.l.b16 %v172
    %v517 = vunpack.c.h.b16 %v172
    %v518 = vunpack.c.l.b16 %v173
    %v519 = vunpack.c.h.b16 %v173
    %v520 = vunpack.c.l.b16 %v174
    %v521 = vunpack.c.h.b16 %v174
    %v522 = vunpack.c.l.b16 %v175
    %v523 = vunpack.c.h.b16 %v175
    %v524 = vunpack.c.l.b16 %v176
    %v525 = vunpack.c.h.b16 %v176
    %v526 = vunpack.c.l.b16 %v177
    %v527 = vunpack.c.h.b16 %v177
    %v528 = vunpack.c.l.b16 %v178
    %v529 = vunpack.c.h.b16 %v178
    %v530 = vunpack.c.l.b16 %v179
    %v531 = vunpack.c.h.b16 %v179
    %v532 = vunpack.c.l.b16 %v180
    %v533 = vunpack.c.h.b16 %v180
    %v534 = vunpack.c.l.b16 %v181
    %v535 = vunpack.c.h.b16 %v181
    %v536 = vunpack.c.l.b16 %v182
    %v537 = vunpack.c.h.b16 %v182
    %v538 = vunpack.c.l.b16 %v183
    %v539 = vunpack.c.h.b16 %v183
    %v540 = vunpack.c.l.b16 %v184
    %v541 = vunpack.c.h.b16 %v184
    %v542 = vunpack.c.l.b16 %v185
    %v543 = vunpack.c.h.b16 %v185
    %v544 = vunpack.c.l.b16 %v186
    %v545 = vunpack.c.h.b16 %v186
    %v546 = vunpack.c.l.b16 %v187
    %v547 = vunpack.c.h.b16 %v187
    %v548 = vunpack.c.l.b16 %v188
    %v549 = vunpack.c.h.b16 %v188
    %v550 = vunpack.c.l.b16 %v189
    %v551 = vunpack.c.h.b16 %v189
    %v552 = vunpack.c.l.b16 %v190
    %v553 = vunpack.c.h.b16 %v190
    %v554 = vunpack.c.l.b16 %v191
    %v555 = vunpack.c.h.b16 %v191
    %v556 = vunpack.c.l.b16 %v192
    %v557 = vunpack.c.h.b16 %v192
    %v558 = vunpack.c.l.b16 %v193
    %v559 = vunpack.c.h.b16 %v193
    %v560 = vunpack.c.l.b16 %v194
    %v561 = vunpack.c.h.b16 %v194
    %v562 = vunpack.c.l.b16 %v195
    %v563 = vunpack.c.h.b16 %v195
    %v564 = vunpack.c.l.b16 %v196
    %v565 = vunpack.c.h.b16 %v196
    %v566 = vunpack.c.l.b16 %v197
    %v567 = vunpack.c.h.b16 %v197
    %v568 = vunpack.c.l.b16 %v198
    %v569 = vunpack.c.h.b16 %v198
    %v570 = vunpack.c.l.b16 %v199
    %v571 = vunpack.c.h.b16 %v199
    %v572 = vunpack.c.l.b16 %v200
    %v573 = vunpack.c.h.b16 %v200
    %v574 = vunpack.c.l.b16 %v201
    %v575 = vunpack.c.h.b16 %v201
    %v576 = vunpack.c.l.b16 %v202
    %v577 = vunpack.c.h.b16 %v202
    %v578 = vunpack.c.l.b16 %v203
    %v579 = vunpack.c.h.b16 %v203
    %v580 = vunpack.c.l.b16 %v204
    %v581 = vunpack.c.h.b16 %v204
    %v582 = vunpack.c.l.b16 %v205
    %v583 = vunpack.c.h.b16 %v205
    %v584 = vunpack.c.l.b16 %v206
    %v585 = vunpack.c.h.b16 %v206
    %v586 = vunpack.c.l.b16 %v207
    %v587 = vunpack.c.h.b16 %v207
    %v588 = vunpack.c.l.b16 %v208
    %v589 = vunpack.c.h.b16 %v208
    %v590 = vunpack.c.l.b16 %v209
    %v591 = vunpack.c.h.b16 %v209
    %v592 = vunpack.c.l.b16 %v210
    %v593 = vunpack.c.h.b16 %v210
    %v594 = vunpack.c.l.b16 %v211
    %v595 = vunpack.c.h.b16 %v211
    %v596 = vunpack.c.l.b16 %v212
    %v597 = vunpack.c.h.b16 %v212
    %v598 = vunpack.c.l.b16 %v213
    %v599 = vunpack.c.h.b16 %v213
    %v600 = vunpack.c.l.b16 %v214
    %v601 = vunpack.c.h.b16 %v214
    %v602 = vunpack.c.l.b16 %v215
    %v603 = vunpack.c.h.b16 %v215
    %v604 = vunpack.c.l.b16 %v216
    %v605 = vunpack.c.h.b16 %v216
    %v606 = vunpack.c.l.b16 %v217
    %v607 = vunpack.c.h.b16 %v217
    %v608 = vunpack.c.l.b16 %v218
    %v609 = vunpack.c.h.b16 %v218
    %v610 = vunpack.c.l.b16 %v219
    %v611 = vunpack.c.h.b16 %v219
    %v612 = vunpack.c.l.b16 %v220
    %v613 = vunpack.c.h.b16 %v220
    %v614 = vunpack.c.l.b16 %v221
    %v615 = vunpack.c.h.b16 %v221
    %v616 = vunpack.c.l.b16 %v222
    %v617 = vunpack.c.h.b16 %v222
    %v618 = vunpack.c.l.b16 %v223
    %v619 = vunpack.c.h.b16 %v223
    %v620 = vunpack.c.l.b16 %v224
    %v621 = vunpack.c.h.b16 %v224
    %v622 = vunpack.c.l.b16 %v225
    %v623 = vunpack.c.h.b16 %v225
    %v624 = vunpack.c.l.b16 %v226
    %v625 = vunpack.c.h.b16 %v226
    %v626 = vunpack.c.l.b16 %v227
    %v627 = vunpack.c.h.b16 %v227
    %v628 = vunpack.c.l.b16 %v228
    %v629 = vunpack.c.h.b16 %v228
    %v630 = vunpack.c.l.b16 %v229
    %v631 = vunpack.c.h.b16 %v229
    %v632 = vunpack.c.l.b16 %v230
    %v633 = vunpack.c.h.b16 %v230
    %v634 = vunpack.c.l.b16 %v231
    %v635 = vunpack.c.h.b16 %v231
    %v636 = vunpack.c.l.b16 %v232
    %v637 = vunpack.c.h.b16 %v232
    %v638 = vunpack.c.l.b16 %v233
    %v639 = vunpack.c.h.b16 %v233
    %v640 = vpack.c.b16 %v388, %v384
    %v641 = vpack.c.b16 %v389, %v385
    %v642 = vpack.c.b16 %v390, %v386
    %v643 = vpack.c.b16 %v391, %v387
    %v644 = vpack.c.b16 %v396, %v392
    %v645 = vpack.c.b16 %v397, %v393
    %v646 = vpack.c.b16 %v398, %v394
    %v647 = vpack.c.b16 %v399, %v395
    %v648 = vpack.c.b16 %v404, %v400
    %v649 = vpack.c.b16 %v405, %v401
    %v650 = vpack.c.b16 %v406, %v402
    %v651 = vpack.c.b16 %v407, %v403
    %v652 = vpack.c.b16 %v412, %v408
    %v653 = vpack.c.b16 %v413, %v409
    %v654 = vpack.c.b16 %v414, %v410
    %v655 = vpack.c.b16 %v415, %v411
    %v656 = vpack.c.b16 %v420, %v416
    %v657 = vpack.c.b16 %v421, %v417
    %v658 = vpack.c.b16 %v422, %v418
    %v659 = vpack.c.b16 %v423, %v419
    %v660 = vpack.c.b16 %v428, %v424
    %v661 = vpack.c.b16 %v429, %v425
    %v662 = vpack.c.b16 %v430, %v426
    %v663 = vpack.c.b16 %v431, %v427
    %v664 = vpack.c.b16 %v436, %v432
    %v665 = vpack.c.b16 %v437, %v433
    %v666 = vpack.c.b16 %v438, %v434
    %v667 = vpack.c.b16 %v439, %v435
    %v668 = vpack.c.b16 %v444, %v440
    %v669 = vpack.c.b16 %v445, %v441
    %v670 = vpack.c.b16 %v446, %v442
    %v671 = vpack.c.b16 %v447, %v443
    %v672 = vpack.c.b16 %v452, %v448
    %v673 = vpack.c.b16 %v453, %v449
    %v674 = vpack.c.b16 %v454, %v450
    %v675 = vpack.c.b16 %v455, %v451
    %v676 = vpack.c.b16 %v460, %v456
    %v677 = vpack.c.b16 %v461, %v457
    %v678 = vpack.c.b16 %v462, %v458
    %v679 = vpack.c.b16 %v463, %v459
    %v680 = vpack.c.b16 %v468, %v464
    %v681 = vpack.c.b16 %v469, %v465
    %v682 = vpack.c.b16 %v470, %v466
    %v683 = vpack.c.b16 %v471, %v467
    %v684 = vpack.c.b16 %v476, %v472
    %v685 = vpack.c.b16 %v477, %v473
    %v686 = vpack.c.b16 %v478, %v474
    %v687 = vpack.c.b16 %v479, %v475
    %v688 = vpack.c.b16 %v484, %v480
    %v689 = vpack.c.b16 %v485, %v481
    %v690 = vpack.c.b16 %v486, %v482
    %v691 = vpack.c.b16 %v487, %v483
    %v692 = vpack.c.b16 %v492, %v488
    %v693 = vpack.c.b16 %v493, %v489
    %v694 = vpack.c.b16 %v494, %v490
    %v695 = vpack.c.b16 %v495, %v491
    %v696 = vpack.c.b16 %v500, %v496
    %v697 = vpack.c.b16 %v501, %v497
    %v698 = vpack.c.b16 %v502, %v498
    %v699 = vpack.c.b16 %v503, %v499
    %v700 = vpack.c.b16 %v508, %v504
    %v701 = vpack.c.b16 %v509, %v505
    %v702 = vpack.c.b16 %v510, %v506
    %v703 = vpack.c.b16 %v511, %v507
    %v704 = vpack.c.b16 %v516, %v512
    %v705 = vpack.c.b16 %v517, %v513
    %v706 = vpack.c.b16 %v518, %v514
    %v707 = vpack.c.b16 %v519, %v515
    %v708 = vpack.c.b16 %v524, %v520
    %v709 = vpack.c.b16 %v525, %v521
    %v710 = vpack.c.b16 %v526, %v522
    %v711 = vpack.c.b16 %v527, %v523
    %v712 = vpack.c.b16 %v532, %v528
    %v713 = vpack.c.b16 %v533, %v529
    %v714 = vpack.c.b16 %v534, %v530
    %v715 = vpack.c.b16 %v535, %v531
    %v716 = vpack.c.b16 %v540, %v536
    %v717 = vpack.c.b16 %v541, %v537
    %v718 = vpack.c.b16 %v542, %v538
    %v719 = vpack.c.b16 %v543, %v539
    %v720 = vpack.c.b16 %v548, %v544
    %v721 = vpack.c.b16 %v549, %v545
    %v722 = vpack.c.b16 %v550, %v546
    %v723 = vpack.c.b16 %v551, %v547
    %v724 = vpack.c.b16 %v556, %v552
    %v725 = vpack.c.b16 %v557, %v553
    %v726 = vpack.c.b16 %v558, %v554
    %v727 = vpack.c.b16 %v559, %v555
    %v728 = vpack.c.b16 %v564, %v560
    %v729 = vpack.c.b16 %v565, %v561
    %v730 = vpack.c.b16 %v566, %v562
    %v731 = vpack.c.b16 %v567, %v563
    %v732 = vpack.c.b16 %v572, %v568
    %v733 = vpack.c.b16 %v573, %v569
    %v734 = vpack.c.b16 %v574, %v570
    %v735 = vpack.c.b16 %v575, %v571
    %v736 = vpack.c.b16 %v580, %v576
    %v737 = vpack.c.b16 %v581, %v577
    %v738 = vpack.c.b16 %v582, %v578
    %v739 = vpack.c.b16 %v583, %v579
    %v740 = vpack.c.b16 %v588, %v584
    %v741 = vpack.c.b16 %v589, %v585
    %v742 = vpack.c.b16 %v590, %v586
    %v743 = vpack.c.b16 %v591, %v587
    %v744 = vpack.c.b16 %v596, %v592
    %v745 = vpack.c.b16 %v597, %v593
    %v746 = vpack.c.b16 %v598, %v594
    %v747 = vpack.c.b16 %v599, %v595
    %v748 = vpack.c.b16 %v604, %v600
    %v749 = vpack.c.b16 %v605, %v601
    %v750 = vpack.c.b16 %v606, %v602
    %v751 = vpack.c.b16 %v607, %v603
    %v752 = vpack.c.b16 %v612, %v608
    %v753 = vpack.c.b16 %v613, %v609
    %v754 = vpack.c.b16 %v614, %v610
    %v755 = vpack.c.b16 %v615, %v611
    %v756 = vpack.c.b16 %v620, %v616
    %v757 = vpack.c.b16 %v621, %v617
    %v758 = vpack.c.b16 %v622, %v618
    %v759 = vpack.c.b16 %v623, %v619
    %v760 = vpack.c.b16 %v628, %v624
    %v761 = vpack.c.b16 %v629, %v625
    %v762 = vpack.c.b16 %v630, %v626
    %v763 = vpack.c.b16 %v631, %v627
    %v764 = vpack.c.b16 %v636, %v632
    %v765 = vpack.c.b16 %v637, %v633
    %v766 = vpack.c.b16 %v638, %v634
    %v767 = vpack.c.b16 %v639, %v635
    %896 = vmatprep.subr.bf16.mxu0 %v641
    %897 = vmatpush1.bf16.msra.mxu0 %v640
    %898 = vmatprep.subr.bf16.mxu0 %v645
    %899 = vmatpush1.bf16.msra.mxu0 %v644
    %900 = vmatprep.subr.bf16.mxu0 %v649
    %901 = vmatpush1.bf16.msra.mxu0 %v648
    %902 = vmatprep.subr.bf16.mxu0 %v653
    %903 = vmatpush1.bf16.msra.mxu0 %v652
    %904 = vmatprep.subr.bf16.mxu0 %v657
    %905 = vmatpush1.bf16.msra.mxu0 %v656
    %906 = vmatprep.subr.bf16.mxu0 %v661
    %907 = vmatpush1.bf16.msra.mxu0 %v660
    %908 = vmatprep.subr.bf16.mxu0 %v665
    %909 = vmatpush1.bf16.msra.mxu0 %v664
    %910 = vmatprep.subr.bf16.mxu0 %v669
    %911 = vmatpush1.bf16.msra.mxu0 %v668
    %912 = vmatprep.subr.bf16.mxu0 %v673
    %913 = vmatpush1.bf16.msra.mxu0 %v672
    %914 = vmatprep.subr.bf16.mxu0 %v677
    %915 = vmatpush1.bf16.msra.mxu0 %v676
    %916 = vmatprep.subr.bf16.mxu0 %v681
    %917 = vmatpush1.bf16.msra.mxu0 %v680
    %918 = vmatprep.subr.bf16.mxu0 %v685
    %919 = vmatpush1.bf16.msra.mxu0 %v684
    %920 = vmatprep.subr.bf16.mxu0 %v689
    %921 = vmatpush1.bf16.msra.mxu0 %v688
    %922 = vmatprep.subr.bf16.mxu0 %v693
    %923 = vmatpush1.bf16.msra.mxu0 %v692
    %924 = vmatprep.subr.bf16.mxu0 %v697
    %925 = vmatpush1.bf16.msra.mxu0 %v696
    %926 = vmatprep.subr.bf16.mxu0 %v701
    %927 = vmatpush1.bf16.msra.mxu0 %v700
    %928 = vmatprep.mubr.bf16.mxu0 %v103
    %929 = vmatmul.mubr.bf16.gmra.mrb[0].mxu0 %v102
    %v930 = vpop.f32.mrb[0].mxu0
    %v931 = vadd.f32 %v239, %v930
    %v932 = vpop.f32.mrb[0].mxu0
    %v933 = vadd.f32 %v243, %v932
    %v934 = vpop.f32.mrb[0].mxu0
    %v935 = vpop.f32.mrb[0].mxu0
    %936 = vdwg.mxu0
    %937 = vmatprep.subr.bf16.mxu0 %v705
    %938 = vmatpush1.bf16.msra.mxu0 %v704
    %939 = vmatprep.subr.bf16.mxu0 %v709
    %940 = vmatpush1.bf16.msra.mxu0 %v708
    %941 = vmatprep.subr.bf16.mxu0 %v713
    %942 = vmatpush1.bf16.msra.mxu0 %v712
    %943 = vmatprep.subr.bf16.mxu0 %v717
    %944 = vmatpush1.bf16.msra.mxu0 %v716
    %945 = vmatprep.subr.bf16.mxu0 %v721
    %946 = vmatpush1.bf16.msra.mxu0 %v720
    %947 = vmatprep.subr.bf16.mxu0 %v725
    %948 = vmatpush1.bf16.msra.mxu0 %v724
    %949 = vmatprep.subr.bf16.mxu0 %v729
    %950 = vmatpush1.bf16.msra.mxu0 %v728
    %951 = vmatprep.subr.bf16.mxu0 %v733
    %952 = vmatpush1.bf16.msra.mxu0 %v732
    %953 = vmatprep.subr.bf16.mxu0 %v737
    %954 = vmatpush1.bf16.msra.mxu0 %v736
    %955 = vmatprep.subr.bf16.mxu0 %v741
    %956 = vmatpush1.bf16.msra.mxu0 %v740
    %957 = vmatprep.subr.bf16.mxu0 %v745
    %958 = vmatpush1.bf16.msra.mxu0 %v744
    %959 = vmatprep.subr.bf16.mxu0 %v749
    %960 = vmatpush1.bf16.msra.mxu0 %v748
    %961 = vmatprep.subr.bf16.mxu0 %v753
    %962 = vmatpush1.bf16.msra.mxu0 %v752
    %963 = vmatprep.subr.bf16.mxu0 %v757
    %964 = vmatpush1.bf16.msra.mxu0 %v756
    %965 = vmatprep.subr.bf16.mxu0 %v761
    %966 = vmatpush1.bf16.msra.mxu0 %v760
    %967 = vmatprep.subr.bf16.mxu0 %v765
    %968 = vmatpush1.bf16.msra.mxu0 %v764
    %969 = vmatprep.mubr.bf16.mxu0 %v105
    %970 = vmatmul.mubr.bf16.gmra.mrb[0].mxu0 %v104
    %v971 = vpop.f32.mrb[0].mxu0
    %v972 = vadd.f32 %v931, %v971
    %v973 = vpop.f32.mrb[0].mxu0
    %v974 = vadd.f32 %v933, %v973
    %v975 = vpop.f32.mrb[0].mxu0
    %v976 = vpop.f32.mrb[0].mxu0
    %977 = vdwg.mxu0
    %978 = vmatprep.subr.bf16.mxu0 %v643
    %979 = vmatpush1.bf16.msra.mxu0 %v642
    %980 = vmatprep.subr.bf16.mxu0 %v647
    %981 = vmatpush1.bf16.msra.mxu0 %v646
    %982 = vmatprep.subr.bf16.mxu0 %v651
    %983 = vmatpush1.bf16.msra.mxu0 %v650
    %984 = vmatprep.subr.bf16.mxu0 %v655
    %985 = vmatpush1.bf16.msra.mxu0 %v654
    %986 = vmatprep.subr.bf16.mxu0 %v659
    %987 = vmatpush1.bf16.msra.mxu0 %v658
    %988 = vmatprep.subr.bf16.mxu0 %v663
    %989 = vmatpush1.bf16.msra.mxu0 %v662
    %990 = vmatprep.subr.bf16.mxu0 %v667
    %991 = vmatpush1.bf16.msra.mxu0 %v666
    %992 = vmatprep.subr.bf16.mxu0 %v671
    %993 = vmatpush1.bf16.msra.mxu0 %v670
    %994 = vmatprep.subr.bf16.mxu0 %v675
    %995 = vmatpush1.bf16.msra.mxu0 %v674
    %996 = vmatprep.subr.bf16.mxu0 %v679
    %997 = vmatpush1.bf16.msra.mxu0 %v678
    %998 = vmatprep.subr.bf16.mxu0 %v683
    %999 = vmatpush1.bf16.msra.mxu0 %v682
    %1000 = vmatprep.subr.bf16.mxu0 %v687
    %1001 = vmatpush1.bf16.msra.mxu0 %v686
    %1002 = vmatprep.subr.bf16.mxu0 %v691
    %1003 = vmatpush1.bf16.msra.mxu0 %v690
    %1004 = vmatprep.subr.bf16.mxu0 %v695
    %1005 = vmatpush1.bf16.msra.mxu0 %v694
    %1006 = vmatprep.subr.bf16.mxu0 %v699
    %1007 = vmatpush1.bf16.msra.mxu0 %v698
    %1008 = vmatprep.subr.bf16.mxu0 %v703
    %1009 = vmatpush1.bf16.msra.mxu0 %v702
    %1010 = vmatprep.mubr.bf16.mxu0 %v103
    %1011 = vmatmul.mubr.bf16.gmra.mrb[0].mxu0 %v102
    %v1012 = vpop.f32.mrb[0].mxu0
    %v1013 = vadd.f32 %v247, %v1012
    %v1014 = vpop.f32.mrb[0].mxu0
    %v1015 = vadd.f32 %v251, %v1014
    %v1016 = vpop.f32.mrb[0].mxu0
    %v1017 = vpop.f32.mrb[0].mxu0
    %1018 = vdwg.mxu0
    %1019 = vmatprep.subr.bf16.mxu0 %v707
    %1020 = vmatpush1.bf16.msra.mxu0 %v706
    %1021 = vmatprep.subr.bf16.mxu0 %v711
    %1022 = vmatpush1.bf16.msra.mxu0 %v710
    %1023 = vmatprep.subr.bf16.mxu0 %v715
    %1024 = vmatpush1.bf16.msra.mxu0 %v714
    %1025 = vmatprep.subr.bf16.mxu0 %v719
    %1026 = vmatpush1.bf16.msra.mxu0 %v718
    %1027 = vmatprep.subr.bf16.mxu0 %v723
    %1028 = vmatpush1.bf16.msra.mxu0 %v722
    %1029 = vmatprep.subr.bf16.mxu0 %v727
    %1030 = vmatpush1.bf16.msra.mxu0 %v726
    %1031 = vmatprep.subr.bf16.mxu0 %v731
    %1032 = vmatpush1.bf16.msra.mxu0 %v730
    %1033 = vmatprep.subr.bf16.mxu0 %v735
    %1034 = vmatpush1.bf16.msra.mxu0 %v734
    %1035 = vmatprep.subr.bf16.mxu0 %v739
    %1036 = vmatpush1.bf16.msra.mxu0 %v738
    %1037 = vmatprep.subr.bf16.mxu0 %v743
    %1038 = vmatpush1.bf16.msra.mxu0 %v742
    %1039 = vmatprep.subr.bf16.mxu0 %v747
    %1040 = vmatpush1.bf16.msra.mxu0 %v746
    %1041 = vmatprep.subr.bf16.mxu0 %v751
    %1042 = vmatpush1.bf16.msra.mxu0 %v750
    %1043 = vmatprep.subr.bf16.mxu0 %v755
    %1044 = vmatpush1.bf16.msra.mxu0 %v754
    %1045 = vmatprep.subr.bf16.mxu0 %v759
    %1046 = vmatpush1.bf16.msra.mxu0 %v758
    %1047 = vmatprep.subr.bf16.mxu0 %v763
    %1048 = vmatpush1.bf16.msra.mxu0 %v762
    %1049 = vmatprep.subr.bf16.mxu0 %v767
    %1050 = vmatpush1.bf16.msra.mxu0 %v766
    %1051 = vmatprep.mubr.bf16.mxu0 %v105
    %1052 = vmatmul.mubr.bf16.gmra.mrb[0].mxu0 %v104
    %v1053 = vpop.f32.mrb[0].mxu0
    %v1054 = vadd.f32 %v1013, %v1053
    %v1055 = vpop.f32.mrb[0].mxu0
    %v1056 = vadd.f32 %v1015, %v1055
    %v1057 = vpop.f32.mrb[0].mxu0
    %v1058 = vpop.f32.mrb[0].mxu0
    %1059 = vdwg.mxu0
    %v1060 = vmul.f32 %v972, 0.5
    %v1061 = vmul.f32 %v974, 0.5
    %v1062 = vmul.f32 %v1054, 0.5
    %v1063 = vmul.f32 %v1056, 0.5
    %v1064 = vtanh.pop %v1060
    %v1065 = vtanh.pop %v1061
    %v1066 = vtanh.pop %v1062
    %v1067 = vtanh.pop %v1063
    %v1068 = vadd.f32 %v1064, 1.0
    %v1069 = vadd.f32 %v1065, 1.0
    %v1070 = vadd.f32 %v1066, 1.0
    %v1071 = vadd.f32 %v1067, 1.0
    %v1072 = vmul.f32 %v1068, 0.5
    %v1073 = vmul.f32 %v1069, 0.5
    %v1074 = vmul.f32 %v1070, 0.5
    %v1075 = vmul.f32 %v1071, 0.5
    %v1076 = vpack.c.bf16 %v1072, %v1072
    %v1077 = vpack.c.bf16 %v1073, %v1073
    %v1078 = vpack.c.bf16 %v1074, %v1074
    %v1079 = vpack.c.bf16 %v1075, %v1075
    %v1080 = vld [vmem:[%s5] sm:$0xf]
    %v1081 = vld [vmem:[%s5 + $0x4] sm:$0xf]
    %v1082 = vld [vmem:[%s5 + $0x8] sm:$0xf]
    %v1083 = vld [vmem:[%s5 + $0xc] sm:$0xf]
    %v1084 = vld [vmem:[%s5 + $0x10] sm:$0xf]
    %v1085 = vld [vmem:[%s5 + $0x14] sm:$0xf]
    %v1086 = vld [vmem:[%s5 + $0x18] sm:$0xf]
    %v1087 = vld [vmem:[%s5 + $0x1c] sm:$0xf]
    %v1088 = vld [vmem:[%s5 + $0x20] sm:$0xf]
    %v1089 = vld [vmem:[%s5 + $0x24] sm:$0xf]
    %v1090 = vld [vmem:[%s5 + $0x28] sm:$0xf]
    %v1091 = vld [vmem:[%s5 + $0x2c] sm:$0xf]
    %v1092 = vld [vmem:[%s5 + $0x30] sm:$0xf]
    %v1093 = vld [vmem:[%s5 + $0x34] sm:$0xf]
    %v1094 = vld [vmem:[%s5 + $0x38] sm:$0xf]
    %v1095 = vld [vmem:[%s5 + $0x3c] sm:$0xf]
    %v1096 = vld [vmem:[%s5 + $0x40] sm:$0xf]
    %v1097 = vld [vmem:[%s5 + $0x44] sm:$0xf]
    %v1098 = vld [vmem:[%s5 + $0x48] sm:$0xf]
    %v1099 = vld [vmem:[%s5 + $0x4c] sm:$0xf]
    %v1100 = vld [vmem:[%s5 + $0x50] sm:$0xf]
    %v1101 = vld [vmem:[%s5 + $0x54] sm:$0xf]
    %v1102 = vld [vmem:[%s5 + $0x58] sm:$0xf]
    %v1103 = vld [vmem:[%s5 + $0x5c] sm:$0xf]
    %v1104 = vld [vmem:[%s5 + $0x60] sm:$0xf]
    %v1105 = vld [vmem:[%s5 + $0x64] sm:$0xf]
    %v1106 = vld [vmem:[%s5 + $0x68] sm:$0xf]
    %v1107 = vld [vmem:[%s5 + $0x6c] sm:$0xf]
    %v1108 = vld [vmem:[%s5 + $0x70] sm:$0xf]
    %v1109 = vld [vmem:[%s5 + $0x74] sm:$0xf]
    %v1110 = vld [vmem:[%s5 + $0x78] sm:$0xf]
    %v1111 = vld [vmem:[%s5 + $0x7c] sm:$0xf]
    %v1112 = vld [vmem:[%s5 + $0x80] sm:$0xf]
    %v1113 = vld [vmem:[%s5 + $0x84] sm:$0xf]
    %v1114 = vld [vmem:[%s5 + $0x88] sm:$0xf]
    %v1115 = vld [vmem:[%s5 + $0x8c] sm:$0xf]
    %v1116 = vld [vmem:[%s5 + $0x90] sm:$0xf]
    %v1117 = vld [vmem:[%s5 + $0x94] sm:$0xf]
    %v1118 = vld [vmem:[%s5 + $0x98] sm:$0xf]
    %v1119 = vld [vmem:[%s5 + $0x9c] sm:$0xf]
    %v1120 = vld [vmem:[%s5 + $0xa0] sm:$0xf]
    %v1121 = vld [vmem:[%s5 + $0xa4] sm:$0xf]
    %v1122 = vld [vmem:[%s5 + $0xa8] sm:$0xf]
    %v1123 = vld [vmem:[%s5 + $0xac] sm:$0xf]
    %v1124 = vld [vmem:[%s5 + $0xb0] sm:$0xf]
    %v1125 = vld [vmem:[%s5 + $0xb4] sm:$0xf]
    %v1126 = vld [vmem:[%s5 + $0xb8] sm:$0xf]
    %v1127 = vld [vmem:[%s5 + $0xbc] sm:$0xf]
    %v1128 = vld [vmem:[%s5 + $0xc0] sm:$0xf]
    %v1129 = vld [vmem:[%s5 + $0xc4] sm:$0xf]
    %v1130 = vld [vmem:[%s5 + $0xc8] sm:$0xf]
    %v1131 = vld [vmem:[%s5 + $0xcc] sm:$0xf]
    %v1132 = vld [vmem:[%s5 + $0xd0] sm:$0xf]
    %v1133 = vld [vmem:[%s5 + $0xd4] sm:$0xf]
    %v1134 = vld [vmem:[%s5 + $0xd8] sm:$0xf]
    %v1135 = vld [vmem:[%s5 + $0xdc] sm:$0xf]
    %v1136 = vld [vmem:[%s5 + $0xe0] sm:$0xf]
    %v1137 = vld [vmem:[%s5 + $0xe4] sm:$0xf]
    %v1138 = vld [vmem:[%s5 + $0xe8] sm:$0xf]
    %v1139 = vld [vmem:[%s5 + $0xec] sm:$0xf]
    %v1140 = vld [vmem:[%s5 + $0xf0] sm:$0xf]
    %v1141 = vld [vmem:[%s5 + $0xf4] sm:$0xf]
    %v1142 = vld [vmem:[%s5 + $0xf8] sm:$0xf]
    %v1143 = vld [vmem:[%s5 + $0xfc] sm:$0xf]
    %v1144 = vld [vmem:[%s6] sm:$0x1]
    %v1146 = vlaneseq
    %v1147 = vshrl.u32 %v1146, 7
    %v1148 = vsub.s32 0, %v1147
    %v1149 = vrot.slane %v1144, %v1148
    %v1215 = vunpack.c.l.b16 %v1080
    %v1216 = vunpack.c.l.b16 %v1081
    %v1217 = vunpack.c.l.b16 %v1082
    %v1218 = vunpack.c.l.b16 %v1083
    %v1219 = vunpack.c.l.b16 %v1084
    %v1220 = vunpack.c.l.b16 %v1085
    %v1221 = vunpack.c.l.b16 %v1086
    %v1222 = vunpack.c.l.b16 %v1087
    %v1223 = vunpack.c.l.b16 %v1088
    %v1224 = vunpack.c.l.b16 %v1089
    %v1225 = vunpack.c.l.b16 %v1090
    %v1226 = vunpack.c.l.b16 %v1091
    %v1227 = vunpack.c.l.b16 %v1092
    %v1228 = vunpack.c.l.b16 %v1093
    %v1229 = vunpack.c.l.b16 %v1094
    %v1230 = vunpack.c.l.b16 %v1095
    %v1231 = vunpack.c.l.b16 %v1096
    %v1232 = vunpack.c.l.b16 %v1097
    %v1233 = vunpack.c.l.b16 %v1098
    %v1234 = vunpack.c.l.b16 %v1099
    %v1235 = vunpack.c.l.b16 %v1100
    %v1236 = vunpack.c.l.b16 %v1101
    %v1237 = vunpack.c.l.b16 %v1102
    %v1238 = vunpack.c.l.b16 %v1103
    %v1239 = vunpack.c.l.b16 %v1104
    %v1240 = vunpack.c.l.b16 %v1105
    %v1241 = vunpack.c.l.b16 %v1106
    %v1242 = vunpack.c.l.b16 %v1107
    %v1243 = vunpack.c.l.b16 %v1108
    %v1244 = vunpack.c.l.b16 %v1109
    %v1245 = vunpack.c.l.b16 %v1110
    %v1246 = vunpack.c.l.b16 %v1111
    %v1247 = vunpack.c.l.b16 %v1112
    %v1248 = vunpack.c.l.b16 %v1113
    %v1249 = vunpack.c.l.b16 %v1114
    %v1250 = vunpack.c.l.b16 %v1115
    %v1251 = vunpack.c.l.b16 %v1116
    %v1252 = vunpack.c.l.b16 %v1117
    %v1253 = vunpack.c.l.b16 %v1118
    %v1254 = vunpack.c.l.b16 %v1119
    %v1255 = vunpack.c.l.b16 %v1120
    %v1256 = vunpack.c.l.b16 %v1121
    %v1257 = vunpack.c.l.b16 %v1122
    %v1258 = vunpack.c.l.b16 %v1123
    %v1259 = vunpack.c.l.b16 %v1124
    %v1260 = vunpack.c.l.b16 %v1125
    %v1261 = vunpack.c.l.b16 %v1126
    %v1262 = vunpack.c.l.b16 %v1127
    %v1263 = vunpack.c.l.b16 %v1128
    %v1264 = vunpack.c.l.b16 %v1129
    %v1265 = vunpack.c.l.b16 %v1130
    %v1266 = vunpack.c.l.b16 %v1131
    %v1267 = vunpack.c.l.b16 %v1132
    %v1268 = vunpack.c.l.b16 %v1133
    %v1269 = vunpack.c.l.b16 %v1134
    %v1270 = vunpack.c.l.b16 %v1135
    %v1271 = vunpack.c.l.b16 %v1136
    %v1272 = vunpack.c.l.b16 %v1137
    %v1273 = vunpack.c.l.b16 %v1138
    %v1274 = vunpack.c.l.b16 %v1139
    %v1275 = vunpack.c.l.b16 %v1140
    %v1276 = vunpack.c.l.b16 %v1141
    %v1277 = vunpack.c.l.b16 %v1142
    %v1278 = vunpack.c.l.b16 %v1143
    %v1279 = vpack.c.b16 %v1216, %v1215
    %v1280 = vpack.c.b16 %v1218, %v1217
    %v1281 = vpack.c.b16 %v1220, %v1219
    %v1282 = vpack.c.b16 %v1222, %v1221
    %v1283 = vpack.c.b16 %v1224, %v1223
    %v1284 = vpack.c.b16 %v1226, %v1225
    %v1285 = vpack.c.b16 %v1228, %v1227
    %v1286 = vpack.c.b16 %v1230, %v1229
    %v1287 = vpack.c.b16 %v1232, %v1231
    %v1288 = vpack.c.b16 %v1234, %v1233
    %v1289 = vpack.c.b16 %v1236, %v1235
    %v1290 = vpack.c.b16 %v1238, %v1237
    %v1291 = vpack.c.b16 %v1240, %v1239
    %v1292 = vpack.c.b16 %v1242, %v1241
    %v1293 = vpack.c.b16 %v1244, %v1243
    %v1294 = vpack.c.b16 %v1246, %v1245
    %v1295 = vpack.c.b16 %v1248, %v1247
    %v1296 = vpack.c.b16 %v1250, %v1249
    %v1297 = vpack.c.b16 %v1252, %v1251
    %v1298 = vpack.c.b16 %v1254, %v1253
    %v1299 = vpack.c.b16 %v1256, %v1255
    %v1300 = vpack.c.b16 %v1258, %v1257
    %v1301 = vpack.c.b16 %v1260, %v1259
    %v1302 = vpack.c.b16 %v1262, %v1261
    %v1303 = vpack.c.b16 %v1264, %v1263
    %v1304 = vpack.c.b16 %v1266, %v1265
    %v1305 = vpack.c.b16 %v1268, %v1267
    %v1306 = vpack.c.b16 %v1270, %v1269
    %v1307 = vpack.c.b16 %v1272, %v1271
    %v1308 = vpack.c.b16 %v1274, %v1273
    %v1309 = vpack.c.b16 %v1276, %v1275
    %v1310 = vpack.c.b16 %v1278, %v1277
    %1343 = vmatprep.subr.bf16.mxu0 0
    %1344 = vmatpush1.bf16.msra.mxu0 %v1279
    %1345 = vmatprep.subr.bf16.mxu0 0
    %1346 = vmatpush1.bf16.msra.mxu0 %v1280
    %1347 = vmatprep.subr.bf16.mxu0 0
    %1348 = vmatpush1.bf16.msra.mxu0 %v1281
    %1349 = vmatprep.subr.bf16.mxu0 0
    %1350 = vmatpush1.bf16.msra.mxu0 %v1282
    %1351 = vmatprep.subr.bf16.mxu0 0
    %1352 = vmatpush1.bf16.msra.mxu0 %v1283
    %1353 = vmatprep.subr.bf16.mxu0 0
    %1354 = vmatpush1.bf16.msra.mxu0 %v1284
    %1355 = vmatprep.subr.bf16.mxu0 0
    %1356 = vmatpush1.bf16.msra.mxu0 %v1285
    %1357 = vmatprep.subr.bf16.mxu0 0
    %1358 = vmatpush1.bf16.msra.mxu0 %v1286
    %1359 = vmatprep.subr.bf16.mxu0 0
    %1360 = vmatpush1.bf16.msra.mxu0 %v1287
    %1361 = vmatprep.subr.bf16.mxu0 0
    %1362 = vmatpush1.bf16.msra.mxu0 %v1288
    %1363 = vmatprep.subr.bf16.mxu0 0
    %1364 = vmatpush1.bf16.msra.mxu0 %v1289
    %1365 = vmatprep.subr.bf16.mxu0 0
    %1366 = vmatpush1.bf16.msra.mxu0 %v1290
    %1367 = vmatprep.subr.bf16.mxu0 0
    %1368 = vmatpush1.bf16.msra.mxu0 %v1291
    %1369 = vmatprep.subr.bf16.mxu0 0
    %1370 = vmatpush1.bf16.msra.mxu0 %v1292
    %1371 = vmatprep.subr.bf16.mxu0 0
    %1372 = vmatpush1.bf16.msra.mxu0 %v1293
    %1373 = vmatprep.subr.bf16.mxu0 0
    %1374 = vmatpush1.bf16.msra.mxu0 %v1294
    %1375 = vmatprep.mubr.bf16.mxu0 %v1077
    %1376 = vmatmul.mubr.bf16.gmra.mrb[0].mxu0 %v1076
    %v1377 = vpop.f32.mrb[0].mxu0
    %v1378 = vadd.f32 %v1149, %v1377
    %v1379 = vpop.f32.mrb[0].mxu0
    %v1380 = vpop.f32.mrb[0].mxu0
    %v1381 = vpop.f32.mrb[0].mxu0
    %1382 = vdwg.mxu0
    %1383 = vmatprep.subr.bf16.mxu0 0
    %1384 = vmatpush1.bf16.msra.mxu0 %v1295
    %1385 = vmatprep.subr.bf16.mxu0 0
    %1386 = vmatpush1.bf16.msra.mxu0 %v1296
    %1387 = vmatprep.subr.bf16.mxu0 0
    %1388 = vmatpush1.bf16.msra.mxu0 %v1297
    %1389 = vmatprep.subr.bf16.mxu0 0
    %1390 = vmatpush1.bf16.msra.mxu0 %v1298
    %1391 = vmatprep.subr.bf16.mxu0 0
    %1392 = vmatpush1.bf16.msra.mxu0 %v1299
    %1393 = vmatprep.subr.bf16.mxu0 0
    %1394 = vmatpush1.bf16.msra.mxu0 %v1300
    %1395 = vmatprep.subr.bf16.mxu0 0
    %1396 = vmatpush1.bf16.msra.mxu0 %v1301
    %1397 = vmatprep.subr.bf16.mxu0 0
    %1398 = vmatpush1.bf16.msra.mxu0 %v1302
    %1399 = vmatprep.subr.bf16.mxu0 0
    %1400 = vmatpush1.bf16.msra.mxu0 %v1303
    %1401 = vmatprep.subr.bf16.mxu0 0
    %1402 = vmatpush1.bf16.msra.mxu0 %v1304
    %1403 = vmatprep.subr.bf16.mxu0 0
    %1404 = vmatpush1.bf16.msra.mxu0 %v1305
    %1405 = vmatprep.subr.bf16.mxu0 0
    %1406 = vmatpush1.bf16.msra.mxu0 %v1306
    %1407 = vmatprep.subr.bf16.mxu0 0
    %1408 = vmatpush1.bf16.msra.mxu0 %v1307
    %1409 = vmatprep.subr.bf16.mxu0 0
    %1410 = vmatpush1.bf16.msra.mxu0 %v1308
    %1411 = vmatprep.subr.bf16.mxu0 0
    %1412 = vmatpush1.bf16.msra.mxu0 %v1309
    %1413 = vmatprep.subr.bf16.mxu0 0
    %1414 = vmatpush1.bf16.msra.mxu0 %v1310
    %1415 = vmatprep.mubr.bf16.mxu0 %v1079
    %1416 = vmatmul.mubr.bf16.gmra.mrb[0].mxu0 %v1078
    %v1417 = vpop.f32.mrb[0].mxu0
    %v1418 = vadd.f32 %v1378, %v1417
    %v1419 = vpop.f32.mrb[0].mxu0
    %v1420 = vpop.f32.mrb[0].mxu0
    %v1421 = vpop.f32.mrb[0].mxu0
    %1422 = vdwg.mxu0
    %v1423 = vmul.f32 %v1418, 0.5
    %v1424 = vtanh.pop %v1423
    %v1425 = vadd.f32 %v1424, 1.0
    %v1426 = vmul.f32 %v1425, 0.5
    %1427 = vst [vmem:[#allocation2] sm:$0xff] %v1426
    // Predicated region
    $region30: #{deepae_forward.5} parent=1 // pred_check
      _
    $region31: #{deepae_forward.5} parent=1 // pred_check_branch
      %1429 = sbr.rel (0) target = $region33
    $region32: #{deepae_forward.5} parent=1 // pred_region
      %s1431 = ssub.s32 128, 128
      %1432 = vsyncadd [#allocation3], %s1431
      %s1434 = sshll.u32 [#allocation2], 4
      %s1435 = int_to_ptr.vmem [resolvable:$true] %s1434
      %1437 = dma.vmem_to_hbm [thread:$0]  %s1435, 128, %s7, [#allocation3]
    $region33: #{deepae_forward.5} parent=1 // pred_fallthru
      _
    // Predicated region
    $region34: #{deepae_forward.5} parent=1 // pred_check
      _
    $region35: #{deepae_forward.5} parent=1 // pred_check_branch
      %1439 = sbr.rel (0) target = $region37
    $region36: #{deepae_forward.5} parent=1 // pred_region
      %1440 = dma.done [#allocation3], 128
    $region37: #{deepae_forward.5} parent=1 // pred_fallthru
      _
    %1441 = vsyncpa [#allocation3], 1

</llo_original>
